<compile_context>
chip_gen: v7x
topology: tpu7x:2x2x1
jax: 0.10.0
libtpu: 0.0.40
codegen_flags: <defaults>
</compile_context>

<pallas_src>
import functools

import jax
import jax.numpy as jnp
from jax.experimental import pallas as pl
from jax.experimental.pallas import tpu as pltpu


def _round_up(x, m):
    return ((x + m - 1) // m) * m


# ----------------------------- Pallas kernel --------------------------------
def conv_bn_relu_kernel(x0_ref, x1_ref, w_ref, shift_ref, o_ref, xh_ref,
                        *, tap_offsets):
    # x0_ref:    (tm, Cin)            current row tile of flattened padded input (bf16)
    # x1_ref:    (tm, Cin)            next row tile (halo for the shifted taps)
    # w_ref:     (KH*KW, Cin, tn)     BN-scale-folded weights, one slab per tap (bf16)
    # shift_ref: (1, tn)              beta - mean*scale (f32)
    # o_ref:     (tm, tn)             output tile (f32), lane-dense tn
    # xh_ref:    (2*tm, Cin) scratch  tile + halo staged contiguously in VMEM
    tm = x0_ref.shape[0]
    tn = o_ref.shape[1]

    # Stage tile + halo so every shifted window is a simple row slice.
    xh_ref[pl.ds(0, tm), :] = x0_ref[...]
    xh_ref[pl.ds(tm, tm), :] = x1_ref[...]

    acc = jnp.zeros((tm, tn), jnp.float32)
    for t, off in enumerate(tap_offsets):       # static unroll over KH*KW taps
        xwin = xh_ref[pl.ds(off, tm), :]        # rows shifted by this tap's offset
        acc = acc + jnp.dot(xwin, w_ref[t], preferred_element_type=jnp.float32)

    y = acc + shift_ref[...]                    # folded-BN shift
    o_ref[...] = jnp.maximum(y, 0.0).astype(o_ref.dtype)   # ReLU


# ------------------------------- wrapper -------------------------------------
def conv_block_forward(x_nchw, conv_w, gamma, beta, run_mean, run_var,
                       *, stride=1, padding=1, dilation=1, bn_eps=1e-5, tm=128):
    """ConvBlock forward: Conv2d(bias=False) -> BatchNorm(inference) -> ReLU."""
    N, Cin, H, W = x_nchw.shape
    Cout, _, KH, KW = conv_w.shape
    s, p, d = stride, padding, dilation

    Hp, Wp = H + 2 * p, W + 2 * p
    H_out = (Hp - d * (KH - 1) - 1) // s + 1
    W_out = (Wp - d * (KW - 1) - 1) // s + 1

    # NCHW -> NHWC, zero-pad spatially, flatten to (N*Hp*Wp, Cin), bf16.
    x = jnp.transpose(x_nchw, (0, 2, 3, 1))
    xp = jnp.pad(x, ((0, 0), (p, p), (p, p), (0, 0)))
    x2 = xp.reshape(N * Hp * Wp, Cin).astype(jnp.bfloat16)

    # Per-tap row offsets in flattened (padded, stride-1) space.
    tap_offsets = tuple(kh * d * Wp + kw * d
                        for kh in range(KH) for kw in range(KW))
    max_off = max(tap_offsets)
    tm = _round_up(max(tm, max_off), 128)       # halo must fit inside one tile

    m_full = N * Hp * Wp                        # rows computed at padded res
    n_tiles = (m_full + tm - 1) // tm
    rows_x = (n_tiles + 1) * tm                 # +1 block so the halo always exists
    x2 = jnp.pad(x2, ((0, rows_x - m_full), (0, 0)))

    # Fold BN into the weights (scale) and a per-channel shift.
    scale = gamma / jnp.sqrt(run_var + bn_eps)                  # (Cout,)
    shift = beta - run_mean * scale                             # (Cout,)
    cout_p = _round_up(Cout, 128)                               # lane-dense output
    tn = 256 if cout_p % 256 == 0 else 128

    w_f = conv_w.astype(jnp.float32) * scale[:, None, None, None]   # (Cout,Cin,KH,KW)
    w_t = jnp.transpose(w_f, (2, 3, 1, 0)).reshape(KH * KW, Cin, Cout)
    w_t = jnp.pad(w_t, ((0, 0), (0, 0), (0, cout_p - Cout))).astype(jnp.bfloat16)
    shift_p = jnp.pad(shift, (0, cout_p - Cout)).reshape(1, cout_p).astype(jnp.float32)

    kernel = functools.partial(conv_bn_relu_kernel, tap_offsets=tap_offsets)
    out_mat = pl.pallas_call(
        kernel,
        out_shape=jax.ShapeDtypeStruct((n_tiles * tm, cout_p), jnp.float32),
        grid_spec=pltpu.PrefetchScalarGridSpec(
            num_scalar_prefetch=0,
            grid=(n_tiles, cout_p // tn),
            in_specs=[
                pl.BlockSpec((tm, Cin), lambda i, j: (i, 0)),        # row tile
                pl.BlockSpec((tm, Cin), lambda i, j: (i + 1, 0)),    # halo tile
                pl.BlockSpec((KH * KW, Cin, tn), lambda i, j: (0, 0, j)),
                pl.BlockSpec((1, tn), lambda i, j: (0, j)),
            ],
            out_specs=pl.BlockSpec((tm, tn), lambda i, j: (i, j)),
            scratch_shapes=[pltpu.VMEM((2 * tm, Cin), jnp.bfloat16)],
        ),
        compiler_params=pltpu.CompilerParams(
            dimension_semantics=("parallel", "parallel")),
    )(x2, x2, w_t, shift_p)

    # Valid output positions live at (ho*s, wo*s) of the padded stride-1 grid.
    out = out_mat[:m_full].reshape(N, Hp, Wp, cout_p)
    out = out[:, 0:(H_out - 1) * s + 1:s, 0:(W_out - 1) * s + 1:s, :Cout]
    return jnp.transpose(out, (0, 3, 1, 2))      # back to NCHW


# --------------------------------- main --------------------------------------
if __name__ == "__main__":
    key = jax.random.PRNGKey(0)
    kx, kw, kg, kb, km, kv = jax.random.split(key, 6)

    # Small shapes consistent with the module: ConvBlock(4, 8, k=3, s=1, p=1)
    N, Cin, H, W = 2, 4, 16, 16
    Cout, KH, KW = 8, 3, 3

    x = jax.random.normal(kx, (N, Cin, H, W), jnp.float32)
    conv_w = jax.random.normal(kw, (Cout, Cin, KH, KW), jnp.float32) * 0.1
    gamma = jax.random.normal(kg, (Cout,), jnp.float32) * 0.1 + 1.0
    beta = jax.random.normal(kb, (Cout,), jnp.float32) * 0.1
    run_mean = jax.random.normal(km, (Cout,), jnp.float32) * 0.1
    run_var = jax.random.uniform(kv, (Cout,), jnp.float32, 0.5, 1.5)

    out = conv_block_forward(x, conv_w, gamma, beta, run_mean, run_var,
                             stride=1, padding=1, dilation=1, bn_eps=1e-5)
    out = jax.block_until_ready(out)

    # Reference: XLA f32 conv + BN(inference) + ReLU.
    ref = jax.lax.conv_general_dilated(
        x, conv_w, window_strides=(1, 1), padding=((1, 1), (1, 1)),
        dimension_numbers=("NCHW", "OIHW", "NCHW"))
    ref = (ref - run_mean[None, :, None, None]) / jnp.sqrt(
        run_var[None, :, None, None] + 1e-5)
    ref = ref * gamma[None, :, None, None] + beta[None, :, None, None]
    ref = jnp.maximum(ref, 0.0)

    assert out.shape == (N, Cout, H, W)
    # bf16 inputs/weights (f32 accumulation) -> loosened tolerance vs f32 ref.
    assert jnp.allclose(out, ref, atol=5e-2, rtol=5e-2), "mismatch vs reference"

    print("KERNEL_OK")
</pallas_src>

<mosaic_0001>
module attributes {stable_mosaic.version = 11 : i64} {
  func.func @conv_bn_relu_kernel(%arg0: i32, %arg1: i32, %arg2: memref<128x4xbf16, #tpu.memory_space<vmem>>, %arg3: memref<128x4xbf16, #tpu.memory_space<vmem>>, %arg4: memref<9x4x128xbf16, #tpu.memory_space<vmem>>, %arg5: memref<1x128xf32, #tpu.memory_space<vmem>>, %arg6: memref<128x128xf32, #tpu.memory_space<vmem>>, %arg7: memref<256x4xbf16, #tpu.memory_space<vmem>>) attributes {dimension_semantics = [#tpu.dimension_semantics<parallel>, #tpu.dimension_semantics<parallel>], iteration_bounds = array<i64: 6, 1>, scalar_prefetch = 0 : i64, scratch_operands = 1 : i64, tpu.core_type = #tpu.core_type<tc>, window_params = [{transform_indices = @transform_0, window_bounds = array<i64: 128, 4>}, {transform_indices = @transform_1, window_bounds = array<i64: 128, 4>}, {transform_indices = @transform_2, window_bounds = array<i64: 9, 4, 128>}, {transform_indices = @transform_3, window_bounds = array<i64: 1, 128>}, {transform_indices = @transform_4, window_bounds = array<i64: 128, 128>}]} {
    %c0 = arith.constant 0 : index
    %c0_0 = arith.constant 0 : index
    %0 = vector.load %arg2[%c0, %c0_0] : memref<128x4xbf16, #tpu.memory_space<vmem>>, vector<128x4xbf16>
    %c0_1 = arith.constant 0 : index
    %c0_2 = arith.constant 0 : index
    %1 = vector.load %arg7[%c0_1, %c0_2] : memref<256x4xbf16, #tpu.memory_space<vmem>>, vector<128x4xbf16>
    tpu.vector_store %arg7[%c0_1, %c0_2], %0 {strides = array<i32>} : memref<256x4xbf16, #tpu.memory_space<vmem>>, vector<128x4xbf16>,
    %c0_3 = arith.constant 0 : index
    %c0_4 = arith.constant 0 : index
    %2 = vector.load %arg3[%c0_3, %c0_4] : memref<128x4xbf16, #tpu.memory_space<vmem>>, vector<128x4xbf16>
    %c128 = arith.constant 128 : index
    %c0_5 = arith.constant 0 : index
    %3 = vector.load %arg7[%c128, %c0_5] : memref<256x4xbf16, #tpu.memory_space<vmem>>, vector<128x4xbf16>
    tpu.vector_store %arg7[%c128, %c0_5], %2 {strides = array<i32>} : memref<256x4xbf16, #tpu.memory_space<vmem>>, vector<128x4xbf16>,
    %cst = arith.constant 0.000000e+00 : f32
    %4 = vector.broadcast %cst : f32 to vector<128x128xf32>
    %c0_6 = arith.constant 0 : index
    %c0_7 = arith.constant 0 : index
    %5 = vector.load %arg7[%c0_6, %c0_7] : memref<256x4xbf16, #tpu.memory_space<vmem>>, vector<128x4xbf16>
    %c0_8 = arith.constant 0 : index
    %c0_9 = arith.constant 0 : index
    %c0_10 = arith.constant 0 : index
    %6 = vector.load %arg4[%c0_8, %c0_9, %c0_10] : memref<9x4x128xbf16, #tpu.memory_space<vmem>>, vector<1x4x128xbf16>
    %7 = vector.shape_cast %6 : vector<1x4x128xbf16> to vector<4x128xbf16>
    %cst_11 = arith.constant dense<0.000000e+00> : vector<128x128xf32>
    %8 = tpu.matmul %5, %7, %cst_11 {dimension_numbers = #tpu.dot_dimension_numbers<[1], [0], [0], [1], [0, 0, 1, 1], [], []>} : vector<128x4xbf16>, vector<4x128xbf16>, vector<128x128xf32> -> vector<128x128xf32>
    %9 = arith.addf %4, %8 : vector<128x128xf32>
    %c1 = arith.constant 1 : index
    %c0_12 = arith.constant 0 : index
    %10 = vector.load %arg7[%c1, %c0_12] : memref<256x4xbf16, #tpu.memory_space<vmem>>, vector<128x4xbf16>
    %c1_13 = arith.constant 1 : index
    %c0_14 = arith.constant 0 : index
    %c0_15 = arith.constant 0 : index
    %11 = vector.load %arg4[%c1_13, %c0_14, %c0_15] : memref<9x4x128xbf16, #tpu.memory_space<vmem>>, vector<1x4x128xbf16>
    %12 = vector.shape_cast %11 : vector<1x4x128xbf16> to vector<4x128xbf16>
    %cst_16 = arith.constant dense<0.000000e+00> : vector<128x128xf32>
    %13 = tpu.matmul %10, %12, %cst_16 {dimension_numbers = #tpu.dot_dimension_numbers<[1], [0], [0], [1], [0, 0, 1, 1], [], []>} : vector<128x4xbf16>, vector<4x128xbf16>, vector<128x128xf32> -> vector<128x128xf32>
    %14 = arith.addf %9, %13 : vector<128x128xf32>
    %c2 = arith.constant 2 : index
    %c0_17 = arith.constant 0 : index
    %15 = vector.load %arg7[%c2, %c0_17] : memref<256x4xbf16, #tpu.memory_space<vmem>>, vector<128x4xbf16>
    %c2_18 = arith.constant 2 : index
    %c0_19 = arith.constant 0 : index
    %c0_20 = arith.constant 0 : index
    %16 = vector.load %arg4[%c2_18, %c0_19, %c0_20] : memref<9x4x128xbf16, #tpu.memory_space<vmem>>, vector<1x4x128xbf16>
    %17 = vector.shape_cast %16 : vector<1x4x128xbf16> to vector<4x128xbf16>
    %cst_21 = arith.constant dense<0.000000e+00> : vector<128x128xf32>
    %18 = tpu.matmul %15, %17, %cst_21 {dimension_numbers = #tpu.dot_dimension_numbers<[1], [0], [0], [1], [0, 0, 1, 1], [], []>} : vector<128x4xbf16>, vector<4x128xbf16>, vector<128x128xf32> -> vector<128x128xf32>
    %19 = arith.addf %14, %18 : vector<128x128xf32>
    %c18 = arith.constant 18 : index
    %c0_22 = arith.constant 0 : index
    %20 = vector.load %arg7[%c18, %c0_22] : memref<256x4xbf16, #tpu.memory_space<vmem>>, vector<128x4xbf16>
    %c3 = arith.constant 3 : index
    %c0_23 = arith.constant 0 : index
    %c0_24 = arith.constant 0 : index
    %21 = vector.load %arg4[%c3, %c0_23, %c0_24] : memref<9x4x128xbf16, #tpu.memory_space<vmem>>, vector<1x4x128xbf16>
    %22 = vector.shape_cast %21 : vector<1x4x128xbf16> to vector<4x128xbf16>
    %cst_25 = arith.constant dense<0.000000e+00> : vector<128x128xf32>
    %23 = tpu.matmul %20, %22, %cst_25 {dimension_numbers = #tpu.dot_dimension_numbers<[1], [0], [0], [1], [0, 0, 1, 1], [], []>} : vector<128x4xbf16>, vector<4x128xbf16>, vector<128x128xf32> -> vector<128x128xf32>
    %24 = arith.addf %19, %23 : vector<128x128xf32>
    %c19 = arith.constant 19 : index
    %c0_26 = arith.constant 0 : index
    %25 = vector.load %arg7[%c19, %c0_26] : memref<256x4xbf16, #tpu.memory_space<vmem>>, vector<128x4xbf16>
    %c4 = arith.constant 4 : index
    %c0_27 = arith.constant 0 : index
    %c0_28 = arith.constant 0 : index
    %26 = vector.load %arg4[%c4, %c0_27, %c0_28] : memref<9x4x128xbf16, #tpu.memory_space<vmem>>, vector<1x4x128xbf16>
    %27 = vector.shape_cast %26 : vector<1x4x128xbf16> to vector<4x128xbf16>
    %cst_29 = arith.constant dense<0.000000e+00> : vector<128x128xf32>
    %28 = tpu.matmul %25, %27, %cst_29 {dimension_numbers = #tpu.dot_dimension_numbers<[1], [0], [0], [1], [0, 0, 1, 1], [], []>} : vector<128x4xbf16>, vector<4x128xbf16>, vector<128x128xf32> -> vector<128x128xf32>
    %29 = arith.addf %24, %28 : vector<128x128xf32>
    %c20 = arith.constant 20 : index
    %c0_30 = arith.constant 0 : index
    %30 = vector.load %arg7[%c20, %c0_30] : memref<256x4xbf16, #tpu.memory_space<vmem>>, vector<128x4xbf16>
    %c5 = arith.constant 5 : index
    %c0_31 = arith.constant 0 : index
    %c0_32 = arith.constant 0 : index
    %31 = vector.load %arg4[%c5, %c0_31, %c0_32] : memref<9x4x128xbf16, #tpu.memory_space<vmem>>, vector<1x4x128xbf16>
    %32 = vector.shape_cast %31 : vector<1x4x128xbf16> to vector<4x128xbf16>
    %cst_33 = arith.constant dense<0.000000e+00> : vector<128x128xf32>
    %33 = tpu.matmul %30, %32, %cst_33 {dimension_numbers = #tpu.dot_dimension_numbers<[1], [0], [0], [1], [0, 0, 1, 1], [], []>} : vector<128x4xbf16>, vector<4x128xbf16>, vector<128x128xf32> -> vector<128x128xf32>
    %34 = arith.addf %29, %33 : vector<128x128xf32>
    %c36 = arith.constant 36 : index
    %c0_34 = arith.constant 0 : index
    %35 = vector.load %arg7[%c36, %c0_34] : memref<256x4xbf16, #tpu.memory_space<vmem>>, vector<128x4xbf16>
    %c6 = arith.constant 6 : index
    %c0_35 = arith.constant 0 : index
    %c0_36 = arith.constant 0 : index
    %36 = vector.load %arg4[%c6, %c0_35, %c0_36] : memref<9x4x128xbf16, #tpu.memory_space<vmem>>, vector<1x4x128xbf16>
    %37 = vector.shape_cast %36 : vector<1x4x128xbf16> to vector<4x128xbf16>
    %cst_37 = arith.constant dense<0.000000e+00> : vector<128x128xf32>
    %38 = tpu.matmul %35, %37, %cst_37 {dimension_numbers = #tpu.dot_dimension_numbers<[1], [0], [0], [1], [0, 0, 1, 1], [], []>} : vector<128x4xbf16>, vector<4x128xbf16>, vector<128x128xf32> -> vector<128x128xf32>
    %39 = arith.addf %34, %38 : vector<128x128xf32>
    %c37 = arith.constant 37 : index
    %c0_38 = arith.constant 0 : index
    %40 = vector.load %arg7[%c37, %c0_38] : memref<256x4xbf16, #tpu.memory_space<vmem>>, vector<128x4xbf16>
    %c7 = arith.constant 7 : index
    %c0_39 = arith.constant 0 : index
    %c0_40 = arith.constant 0 : index
    %41 = vector.load %arg4[%c7, %c0_39, %c0_40] : memref<9x4x128xbf16, #tpu.memory_space<vmem>>, vector<1x4x128xbf16>
    %42 = vector.shape_cast %41 : vector<1x4x128xbf16> to vector<4x128xbf16>
    %cst_41 = arith.constant dense<0.000000e+00> : vector<128x128xf32>
    %43 = tpu.matmul %40, %42, %cst_41 {dimension_numbers = #tpu.dot_dimension_numbers<[1], [0], [0], [1], [0, 0, 1, 1], [], []>} : vector<128x4xbf16>, vector<4x128xbf16>, vector<128x128xf32> -> vector<128x128xf32>
    %44 = arith.addf %39, %43 : vector<128x128xf32>
    %c38 = arith.constant 38 : index
    %c0_42 = arith.constant 0 : index
    %45 = vector.load %arg7[%c38, %c0_42] : memref<256x4xbf16, #tpu.memory_space<vmem>>, vector<128x4xbf16>
    %c8 = arith.constant 8 : index
    %c0_43 = arith.constant 0 : index
    %c0_44 = arith.constant 0 : index
    %46 = vector.load %arg4[%c8, %c0_43, %c0_44] : memref<9x4x128xbf16, #tpu.memory_space<vmem>>, vector<1x4x128xbf16>
    %47 = vector.shape_cast %46 : vector<1x4x128xbf16> to vector<4x128xbf16>
    %cst_45 = arith.constant dense<0.000000e+00> : vector<128x128xf32>
    %48 = tpu.matmul %45, %47, %cst_45 {dimension_numbers = #tpu.dot_dimension_numbers<[1], [0], [0], [1], [0, 0, 1, 1], [], []>} : vector<128x4xbf16>, vector<4x128xbf16>, vector<128x128xf32> -> vector<128x128xf32>
    %49 = arith.addf %44, %48 : vector<128x128xf32>
    %c0_46 = arith.constant 0 : index
    %c0_47 = arith.constant 0 : index
    %50 = vector.load %arg5[%c0_46, %c0_47] : memref<1x128xf32, #tpu.memory_space<vmem>>, vector<1x128xf32>
    %51 = vector.broadcast %50 : vector<1x128xf32> to vector<128x128xf32>
    %52 = arith.addf %49, %51 : vector<128x128xf32>
    %cst_48 = arith.constant 0.000000e+00 : f32
    %53 = vector.broadcast %cst_48 : f32 to vector<128x128xf32>
    %54 = arith.maximumf %52, %53 : vector<128x128xf32>
    %c0_49 = arith.constant 0 : index
    %c0_50 = arith.constant 0 : index
    %55 = vector.load %arg6[%c0_49, %c0_50] : memref<128x128xf32, #tpu.memory_space<vmem>>, vector<128x128xf32>
    tpu.vector_store %arg6[%c0_49, %c0_50], %54 {strides = array<i32>} : memref<128x128xf32, #tpu.memory_space<vmem>>, vector<128x128xf32>,
    return
  }
  func.func @transform_0(%arg0: i32, %arg1: i32) -> (i32, i32) {
    %c0_i32 = arith.constant 0 : i32
    %c0_i32_0 = arith.constant 0 : i32
    return %arg0, %c0_i32 : i32, i32
  }
  func.func @transform_1(%arg0: i32, %arg1: i32) -> (i32, i32) {
    %c1_i32 = arith.constant 1 : i32
    %0 = arith.addi %arg0, %c1_i32 : i32
    %c0_i32 = arith.constant 0 : i32
    %c0_i32_0 = arith.constant 0 : i32
    return %0, %c0_i32 : i32, i32
  }
  func.func @transform_2(%arg0: i32, %arg1: i32) -> (i32, i32, i32) {
    %c0_i32 = arith.constant 0 : i32
    %c0_i32_0 = arith.constant 0 : i32
    %c0_i32_1 = arith.constant 0 : i32
    return %c0_i32, %c0_i32_0, %arg1 : i32, i32, i32
  }
  func.func @transform_3(%arg0: i32, %arg1: i32) -> (i32, i32) {
    %c0_i32 = arith.constant 0 : i32
    %c0_i32_0 = arith.constant 0 : i32
    return %c0_i32, %arg1 : i32, i32
  }
  func.func @transform_4(%arg0: i32, %arg1: i32) -> (i32, i32) {
    %c0_i32 = arith.constant 0 : i32
    return %arg0, %arg1 : i32, i32
  }
}

</mosaic_0001>

<llo_original>
// kernel: tpu_custom_call.1
$region0: #{tpu_custom_call.1}
  #allocation0 [shape = 'u32[]', space=smem, size = 0x4, offset = 0x4, fixed_abs, tag = 'smem constant byte address 0x4 - core index']
  #allocation1 [shape = 'u32[144,128]{1,0:T(1,128)}', space=vmem, size = 0x12000, scoped, tag = 'internal scratch']
  #allocation2 [shape = 'bf16[256,4]{1,0:T(16,128)(2,1)}', space=vmem, size = 0x10000, scoped, tag = 'scratch operand']
  %s0 = inlined_call_operand.vmem [shape: bf16[896,4], index: 0, kind: input, shape index: {}]
  %s1 = inlined_call_operand.vmem [shape: bf16[896,4], index: 1, kind: input, shape index: {}]
  %s2 = inlined_call_operand.vmem [shape: bf16[9,4,128], index: 2, kind: input, shape index: {}]
  %s3 = inlined_call_operand.vmem [shape: f32[1,128], index: 3, kind: input, shape index: {}]
  %s4 = inlined_call_operand.hbm [shape: f32[768,128], index: 4, kind: output, shape index: {}]
  %s5 = sld [smem:[#allocation0]]
  $region49: #{tpu_custom_call.1} parent=0
    _
  %s7 = ssub.s32 1, %s5
  %s8 = scalar_select 0, %s7, %s5
  $region1: #{tpu_custom_call.1} parent=0
    #allocation3 [shape = 'u8[131072]{0}', space=vmem, size = 0x20000, scoped, tag = 'output window, operand 0']
    #allocation4 [shape = 's32[2]{0}', space=sflag, size = 0x8, scoped, tag = 'scoped memory for tpu_custom_call.1']
    %9 = vsyncpa [#allocation4], 0
    %s10 = scalar_lea.sflag [#allocation4], 1
    %11 = vsyncpa %s10, 0
    loop: start=0, step=1, limit=8
    $region2: #{tpu_custom_call.1} parent=1 // loop_pre_header
      _
    $region3: #{tpu_custom_call.1} parent=1 // loop_header
      %s13 = sphi 0, %s17
      %p14 = scmp.ge.s32.totalorder %s13, 8
      %s20 = sphi 0, %s32
      %s21 = sphi 0, %s28
      %s22 = sphi 0, %s20
      %s23 = sphi 0, %s21
      %s24 = sphi 0, %s22
      %s25 = sphi 0, %s23
      %s35 = sphi 0, %s37
      %s38 = sphi 0, %s35
      %s39 = sphi 0, %s38
      %s55 = sphi 0, %s39
      %s63 = sphi 0, %s65
      %s66 = sphi 0, %s63
      %s67 = sphi 0, %s66
      %s83 = sphi 0, %s67
      %s89 = sphi 0, %s91
      %s92 = sphi 0, %s89
      %s93 = sphi 0, %s92
      %s109 = sphi 0, %s93
      %s115 = sphi 0, %s117
      %s118 = sphi 0, %s115
      %s119 = sphi 0, %s118
      %s135 = sphi 0, %s119
      %s143 = sphi 0, %s145
      %s146 = sphi 0, %s143
      %s147 = sphi 0, %s146
      %s163 = sphi 0, %s147
    $region4: #{tpu_custom_call.1} parent=1 // loop_header_branch
      %16 = sbr.rel (%p14) target = $region8
    $region5: #{tpu_custom_call.1} parent=1 // loop_body
      %s18 = ssub.s32 %s13, 1
      %s19 = ssub.s32 %s13, 2
      %s26 = sadd.s32 1, %s21
      %p27 = scmp.ge.s32.totalorder %s26, 1
      %s28 = scalar_select %p27, 0, %s26
      %s29 = sadd.s32 1, %s20
      %s30 = scalar_select %p27, %s29, %s20
      %p31 = scmp.ge.s32.totalorder %s30, 6
      %s32 = scalar_select %p31, 0, %s30
      %s33 = ssub.s32 %s20, %s32
      %p34 = scmp.eq.s32.totalorder %s33, 0
      %s36 = sadd.s32 %s35, 1
      %s37 = scalar_select %p34, %s35, %s36
      %p40 = pneg %p34
      %p41 = scmp.eq.s32.totalorder %s13, 5
      %p42 = por %p40, %p41
      %p43 = scmp.ne.s32.totalorder %s35, %s38
      %p44 = scmp.eq.s32.totalorder %s13, 0
      %p45 = por %p43, %p44
      %p46 = scmp.ne.s32.totalorder %s35, %s38
      %p47 = scmp.eq.s32.totalorder %s18, 5
      %p48 = por %p46, %p47
      %p49 = scmp.ne.s32.totalorder %s38, %s39
      %p50 = scmp.eq.s32.totalorder %s18, 0
      %p51 = por %p49, %p50
      %p52 = scmp.ne.s32.totalorder %s38, %s39
      %p53 = scmp.eq.s32.totalorder %s19, 5
      %p54 = por %p52, %p53
      %p56 = scmp.ne.s32.totalorder %s39, %s55
      %p57 = scmp.eq.s32.totalorder %s19, 0
      %p58 = por %p56, %p57
      %s59 = sadd.s32 %s20, 1
      %s60 = sadd.s32 %s32, 1
      %s61 = ssub.s32 %s59, %s60
      %p62 = scmp.eq.s32.totalorder %s61, 0
      %s64 = sadd.s32 %s63, 1
      %s65 = scalar_select %p62, %s63, %s64
      %p68 = pneg %p62
      %p69 = scmp.eq.s32.totalorder %s13, 5
      %p70 = por %p68, %p69
      %p71 = scmp.ne.s32.totalorder %s63, %s66
      %p72 = scmp.eq.s32.totalorder %s13, 0
      %p73 = por %p71, %p72
      %p74 = scmp.ne.s32.totalorder %s63, %s66
      %p75 = scmp.eq.s32.totalorder %s18, 5
      %p76 = por %p74, %p75
      %p77 = scmp.ne.s32.totalorder %s66, %s67
      %p78 = scmp.eq.s32.totalorder %s18, 0
      %p79 = por %p77, %p78
      %p80 = scmp.ne.s32.totalorder %s66, %s67
      %p81 = scmp.eq.s32.totalorder %s19, 5
      %p82 = por %p80, %p81
      %p84 = scmp.ne.s32.totalorder %s67, %s83
      %p85 = scmp.eq.s32.totalorder %s19, 0
      %p86 = por %p84, %p85
      %s87 = ssub.s32 %s21, %s28
      %p88 = scmp.eq.s32.totalorder %s87, 0
      %s90 = sadd.s32 %s89, 1
      %s91 = scalar_select %p88, %s89, %s90
      %p94 = pneg %p88
      %p95 = scmp.eq.s32.totalorder %s13, 5
      %p96 = por %p94, %p95
      %p97 = scmp.ne.s32.totalorder %s89, %s92
      %p98 = scmp.eq.s32.totalorder %s13, 0
      %p99 = por %p97, %p98
      %p100 = scmp.ne.s32.totalorder %s89, %s92
      %p101 = scmp.eq.s32.totalorder %s18, 5
      %p102 = por %p100, %p101
      %p103 = scmp.ne.s32.totalorder %s92, %s93
      %p104 = scmp.eq.s32.totalorder %s18, 0
      %p105 = por %p103, %p104
      %p106 = scmp.ne.s32.totalorder %s92, %s93
      %p107 = scmp.eq.s32.totalorder %s19, 5
      %p108 = por %p106, %p107
      %p110 = scmp.ne.s32.totalorder %s93, %s109
      %p111 = scmp.eq.s32.totalorder %s19, 0
      %p112 = por %p110, %p111
      %s113 = ssub.s32 %s21, %s28
      %p114 = scmp.eq.s32.totalorder %s113, 0
      %s116 = sadd.s32 %s115, 1
      %s117 = scalar_select %p114, %s115, %s116
      %p120 = pneg %p114
      %p121 = scmp.eq.s32.totalorder %s13, 5
      %p122 = por %p120, %p121
      %p123 = scmp.ne.s32.totalorder %s115, %s118
      %p124 = scmp.eq.s32.totalorder %s13, 0
      %p125 = por %p123, %p124
      %p126 = scmp.ne.s32.totalorder %s115, %s118
      %p127 = scmp.eq.s32.totalorder %s18, 5
      %p128 = por %p126, %p127
      %p129 = scmp.ne.s32.totalorder %s118, %s119
      %p130 = scmp.eq.s32.totalorder %s18, 0
      %p131 = por %p129, %p130
      %p132 = scmp.ne.s32.totalorder %s118, %s119
      %p133 = scmp.eq.s32.totalorder %s19, 5
      %p134 = por %p132, %p133
      %p136 = scmp.ne.s32.totalorder %s119, %s135
      %p137 = scmp.eq.s32.totalorder %s19, 0
      %p138 = por %p136, %p137
      %s139 = ssub.s32 %s20, %s32
      %s140 = ssub.s32 %s21, %s28
      %s141 = sor.u32 %s139, %s140
      %p142 = scmp.eq.s32.totalorder %s141, 0
      %s144 = sadd.s32 %s143, 1
      %s145 = scalar_select %p142, %s143, %s144
      %p148 = pneg %p142
      %p149 = scmp.eq.s32.totalorder %s13, 5
      %p150 = por %p148, %p149
      %p151 = scmp.ne.s32.totalorder %s143, %s146
      %p152 = scmp.eq.s32.totalorder %s13, 0
      %p153 = por %p151, %p152
      %p154 = scmp.ne.s32.totalorder %s143, %s146
      %p155 = scmp.eq.s32.totalorder %s18, 5
      %p156 = por %p154, %p155
      %p157 = scmp.ne.s32.totalorder %s146, %s147
      %p158 = scmp.eq.s32.totalorder %s18, 0
      %p159 = por %p157, %p158
      %p160 = scmp.ne.s32.totalorder %s146, %s147
      %p161 = scmp.eq.s32.totalorder %s19, 5
      %p162 = por %p160, %p161
      %p164 = scmp.ne.s32.totalorder %s147, %s163
      %p165 = scmp.eq.s32.totalorder %s19, 0
      %p166 = por %p164, %p165
      %p167 = scmp.le.s32.totalorder 1, %s13
      %p168 = scmp.lt.s32.totalorder %s13, 7
      %p169 = pnand %p167, %p168
      %p170 = pneg %p169
      // Predicated region
      $region9: #{tpu_custom_call.1} parent=5 // pred_check
        _
      $region10: #{tpu_custom_call.1} parent=5 // pred_check_branch
        %172 = sbr.rel (%p169) target = $region12
      $region11: #{tpu_custom_call.1} parent=5 // pred_region
        %s173 = ssub.s32 %s13, 1
        // Predicated region
        $region13: #{tpu_custom_call.1} parent=11 // pred_check
          %p174 = pneg %p105
        $region14: #{tpu_custom_call.1} parent=11 // pred_check_branch
          %176 = sbr.rel (%p174) target = $region16
        $region15: #{tpu_custom_call.1} parent=11 // pred_region
          %p177 = scmp.lt.s32.totalorder %s23, 0
          %s178 = scalar_select %p177, %s23, 0
          %s179 = smul.addr %s178, 2
          %s180 = scalar_lea.vmem %s2, %s179
        $region16: #{tpu_custom_call.1} parent=11 // pred_fallthru
          _
        // Predicated region
        $region17: #{tpu_custom_call.1} parent=11 // pred_check
          %p181 = pneg %p131
        $region18: #{tpu_custom_call.1} parent=11 // pred_check_branch
          %183 = sbr.rel (%p181) target = $region20
        $region19: #{tpu_custom_call.1} parent=11 // pred_region
          %p184 = scmp.lt.s32.totalorder %s23, 0
          %s185 = scalar_select %p184, %s23, 0
          %s186 = scalar_lea.vmem %s3, %s185
        $region20: #{tpu_custom_call.1} parent=11 // pred_fallthru
          _
      $region12: #{tpu_custom_call.1} parent=5 // pred_fallthru
        _
      %p187 = scmp.lt.s32.totalorder %s13, 6
      // Predicated region
      $region21: #{tpu_custom_call.1} parent=5 // pred_check
        %p188 = pneg %p187
      $region22: #{tpu_custom_call.1} parent=5 // pred_check_branch
        %190 = sbr.rel (%p188) target = $region24
      $region23: #{tpu_custom_call.1} parent=5 // pred_region
        // Predicated region
        $region25: #{tpu_custom_call.1} parent=23 // pred_check
          %p191 = pneg %p45
        $region26: #{tpu_custom_call.1} parent=23 // pred_check_branch
          %193 = sbr.rel (%p191) target = $region28
        $region27: #{tpu_custom_call.1} parent=23 // pred_region
          %s194 = smul.u32 16, %s20
          %p195 = scmp.lt.s32.totalorder %s194, 111
          %s196 = scalar_select %p195, %s194, 111
          %s197 = smul.addr %s196, 4
          %s198 = scalar_lea.vmem %s0, %s197
          %s199 = smul.u32 16, %s20
        $region28: #{tpu_custom_call.1} parent=23 // pred_fallthru
          _
        // Predicated region
        $region29: #{tpu_custom_call.1} parent=23 // pred_check
          %p200 = pneg %p73
        $region30: #{tpu_custom_call.1} parent=23 // pred_check_branch
          %202 = sbr.rel (%p200) target = $region32
        $region31: #{tpu_custom_call.1} parent=23 // pred_region
          %s203 = sadd.s32 %s20, 1
          %s204 = smul.u32 16, %s203
          %p205 = scmp.lt.s32.totalorder %s204, 111
          %s206 = scalar_select %p205, %s204, 111
          %s207 = smul.addr %s206, 4
          %s208 = scalar_lea.vmem %s1, %s207
          %s209 = sadd.s32 %s20, 1
          %s210 = smul.u32 16, %s209
        $region32: #{tpu_custom_call.1} parent=23 // pred_fallthru
          _
      $region24: #{tpu_custom_call.1} parent=5 // pred_fallthru
        _
      %p211 = scmp.le.s32.totalorder 1, %s13
      %p212 = scmp.lt.s32.totalorder %s13, 7
      %p213 = pnand %p211, %p212
      %p214 = pneg %p213
      // Predicated region
      $region33: #{tpu_custom_call.1} parent=5 // pred_check
        _
      $region34: #{tpu_custom_call.1} parent=5 // pred_check_branch
        %216 = sbr.rel (%p213) target = $region36
      $region35: #{tpu_custom_call.1} parent=5 // pred_region
        %s217 = ssub.s32 %s13, 1
        %s218 = smul.u32 16, %s22
        %p219 = scmp.lt.s32.totalorder %s218, 111
        %s220 = scalar_select %p219, %s218, 111
        %s221 = smul.addr %s220, 4
        %s222 = scalar_lea.vmem %s0, %s221
        %p223 = pneg %p51
        %p224 = pneg %p48
        %s225 = sadd.s32 %s22, 1
        %s226 = smul.u32 16, %s225
        %p227 = scmp.lt.s32.totalorder %s226, 111
        %s228 = scalar_select %p227, %s226, 111
        %s229 = smul.addr %s228, 4
        %s230 = scalar_lea.vmem %s1, %s229
        %p231 = pneg %p79
        %p232 = pneg %p76
        %p233 = scmp.lt.s32.totalorder %s23, 0
        %s234 = scalar_select %p233, %s23, 0
        %s235 = smul.addr %s234, 2
        %s236 = scalar_lea.vmem %s2, %s235
        %p237 = pneg %p105
        %p238 = pneg %p102
        %p239 = scmp.lt.s32.totalorder %s23, 0
        %s240 = scalar_select %p239, %s23, 0
        %s241 = scalar_lea.vmem %s3, %s240
        %p242 = pneg %p131
        %p243 = pneg %p128
        %p244 = pneg %p159
        %p245 = pneg %p156
        %s246 = sand.u32 %s146, 1
        %s247 = scalar_lea.sflag [#allocation4], %s246
        %s248 = sand.u32 %s146, 1
        %s249 = smul.addr %s248, 128
        %s250 = scalar_lea.vmem [#allocation3], %s249
        %s251 = smul.u32 16, %s22
        %p252 = scmp.lt.s32.totalorder %s251, 111
        %s253 = scalar_select %p252, %s251, 111
        %s254 = smul.addr %s253, 4
        %s255 = scalar_lea.vmem %s0, %s254
        %s256 = smul.u32 16, %s22
        %s257 = sadd.s32 %s22, 1
        %s258 = smul.u32 16, %s257
        %p259 = scmp.lt.s32.totalorder %s258, 111
        %s260 = scalar_select %p259, %s258, 111
        %s261 = smul.addr %s260, 4
        %s262 = scalar_lea.vmem %s1, %s261
        %s263 = sadd.s32 %s22, 1
        %s264 = smul.u32 16, %s263
        %p265 = scmp.lt.s32.totalorder %s23, 0
        %s266 = scalar_select %p265, %s23, 0
        %s267 = smul.addr %s266, 2
        %s268 = scalar_lea.vmem %s2, %s267
        %p269 = scmp.lt.s32.totalorder %s23, 0
        %s270 = scalar_select %p269, %s23, 0
        %s271 = scalar_lea.vmem %s3, %s270
        %s272 = smul.u32 16, %s22
        %v274 = vld [vmem:[%s255] sm:$0xf]
        %v275 = vld [vmem:[%s255 + $0x4] sm:$0xf]
        %v276 = vld [vmem:[%s255 + $0x8] sm:$0xf]
        %v277 = vld [vmem:[%s255 + $0xc] sm:$0xf]
        %v278 = vld [vmem:[%s255 + $0x10] sm:$0xf]
        %v279 = vld [vmem:[%s255 + $0x14] sm:$0xf]
        %v280 = vld [vmem:[%s255 + $0x18] sm:$0xf]
        %v281 = vld [vmem:[%s255 + $0x1c] sm:$0xf]
        %v282 = vld [vmem:[%s255 + $0x20] sm:$0xf]
        %v283 = vld [vmem:[%s255 + $0x24] sm:$0xf]
        %v284 = vld [vmem:[%s255 + $0x28] sm:$0xf]
        %v285 = vld [vmem:[%s255 + $0x2c] sm:$0xf]
        %v286 = vld [vmem:[%s255 + $0x30] sm:$0xf]
        %v287 = vld [vmem:[%s255 + $0x34] sm:$0xf]
        %v288 = vld [vmem:[%s255 + $0x38] sm:$0xf]
        %v289 = vld [vmem:[%s255 + $0x3c] sm:$0xf]
        %v306 = vunpack.c.l.b16 %v274
        %v307 = vunpack.c.l.b16 %v275
        %v308 = vunpack.c.l.b16 %v276
        %v309 = vunpack.c.l.b16 %v277
        %v310 = vunpack.c.l.b16 %v278
        %v311 = vunpack.c.l.b16 %v279
        %v312 = vunpack.c.l.b16 %v280
        %v313 = vunpack.c.l.b16 %v281
        %v314 = vunpack.c.l.b16 %v282
        %v315 = vunpack.c.l.b16 %v283
        %v316 = vunpack.c.l.b16 %v284
        %v317 = vunpack.c.l.b16 %v285
        %v318 = vunpack.c.l.b16 %v286
        %v319 = vunpack.c.l.b16 %v287
        %v320 = vunpack.c.l.b16 %v288
        %v321 = vunpack.c.l.b16 %v289
        %v322 = vpack.c.b16 %v307, %v306
        %v323 = vpack.c.b16 %v309, %v308
        %v324 = vpack.c.b16 %v311, %v310
        %v325 = vpack.c.b16 %v313, %v312
        %v326 = vpack.c.b16 %v315, %v314
        %v327 = vpack.c.b16 %v317, %v316
        %v328 = vpack.c.b16 %v319, %v318
        %v329 = vpack.c.b16 %v321, %v320
        %vm338 = vcmask 31744
        %339 = vst.msk [vmem:[#allocation2] sm:$0xff] %vm338, %v322
        %340 = vst.msk [vmem:[#allocation2 + $0x8] sm:$0xff] %vm338, %v323
        %341 = vst.msk [vmem:[#allocation2 + $0x10] sm:$0xff] %vm338, %v324
        %342 = vst.msk [vmem:[#allocation2 + $0x18] sm:$0xff] %vm338, %v325
        %343 = vst.msk [vmem:[#allocation2 + $0x20] sm:$0xff] %vm338, %v326
        %344 = vst.msk [vmem:[#allocation2 + $0x28] sm:$0xff] %vm338, %v327
        %345 = vst.msk [vmem:[#allocation2 + $0x30] sm:$0xff] %vm338, %v328
        %346 = vst.msk [vmem:[#allocation2 + $0x38] sm:$0xff] %vm338, %v329
        %v347 = vld [vmem:[%s262] sm:$0xf]
        %v348 = vld [vmem:[%s262 + $0x4] sm:$0xf]
        %v349 = vld [vmem:[%s262 + $0x8] sm:$0xf]
        %v350 = vld [vmem:[%s262 + $0xc] sm:$0xf]
        %v351 = vld [vmem:[%s262 + $0x10] sm:$0xf]
        %v352 = vld [vmem:[%s262 + $0x14] sm:$0xf]
        %v353 = vld [vmem:[%s262 + $0x18] sm:$0xf]
        %v354 = vld [vmem:[%s262 + $0x1c] sm:$0xf]
        %v355 = vld [vmem:[%s262 + $0x20] sm:$0xf]
        %v356 = vld [vmem:[%s262 + $0x24] sm:$0xf]
        %v357 = vld [vmem:[%s262 + $0x28] sm:$0xf]
        %v358 = vld [vmem:[%s262 + $0x2c] sm:$0xf]
        %v359 = vld [vmem:[%s262 + $0x30] sm:$0xf]
        %v360 = vld [vmem:[%s262 + $0x34] sm:$0xf]
        %v361 = vld [vmem:[%s262 + $0x38] sm:$0xf]
        %v362 = vld [vmem:[%s262 + $0x3c] sm:$0xf]
        %v379 = vunpack.c.l.b16 %v347
        %v380 = vunpack.c.l.b16 %v348
        %v381 = vunpack.c.l.b16 %v349
        %v382 = vunpack.c.l.b16 %v350
        %v383 = vunpack.c.l.b16 %v351
        %v384 = vunpack.c.l.b16 %v352
        %v385 = vunpack.c.l.b16 %v353
        %v386 = vunpack.c.l.b16 %v354
        %v387 = vunpack.c.l.b16 %v355
        %v388 = vunpack.c.l.b16 %v356
        %v389 = vunpack.c.l.b16 %v357
        %v390 = vunpack.c.l.b16 %v358
        %v391 = vunpack.c.l.b16 %v359
        %v392 = vunpack.c.l.b16 %v360
        %v393 = vunpack.c.l.b16 %v361
        %v394 = vunpack.c.l.b16 %v362
        %v395 = vpack.c.b16 %v380, %v379
        %v396 = vpack.c.b16 %v382, %v381
        %v397 = vpack.c.b16 %v384, %v383
        %v398 = vpack.c.b16 %v386, %v385
        %v399 = vpack.c.b16 %v388, %v387
        %v400 = vpack.c.b16 %v390, %v389
        %v401 = vpack.c.b16 %v392, %v391
        %v402 = vpack.c.b16 %v394, %v393
        %411 = vst.msk [vmem:[#allocation2 + $0x40] sm:$0xff] %vm338, %v395
        %412 = vst.msk [vmem:[#allocation2 + $0x48] sm:$0xff] %vm338, %v396
        %413 = vst.msk [vmem:[#allocation2 + $0x50] sm:$0xff] %vm338, %v397
        %414 = vst.msk [vmem:[#allocation2 + $0x58] sm:$0xff] %vm338, %v398
        %415 = vst.msk [vmem:[#allocation2 + $0x60] sm:$0xff] %vm338, %v399
        %416 = vst.msk [vmem:[#allocation2 + $0x68] sm:$0xff] %vm338, %v400
        %417 = vst.msk [vmem:[#allocation2 + $0x70] sm:$0xff] %vm338, %v401
        %418 = vst.msk [vmem:[#allocation2 + $0x78] sm:$0xff] %vm338, %v402
        %v419 = vld [vmem:[#allocation2] sm:$0xff]
        %v420 = vld [vmem:[#allocation2 + $0x8] sm:$0xff]
        %v421 = vld [vmem:[#allocation2 + $0x10] sm:$0xff]
        %v422 = vld [vmem:[#allocation2 + $0x18] sm:$0xff]
        %v423 = vld [vmem:[#allocation2 + $0x20] sm:$0xff]
        %v424 = vld [vmem:[#allocation2 + $0x28] sm:$0xff]
        %v425 = vld [vmem:[#allocation2 + $0x30] sm:$0xff]
        %v426 = vld [vmem:[#allocation2 + $0x38] sm:$0xff]
        %v427 = vld [vmem:[%s268] sm:$0x3]
        %v428 = vld [vmem:[#allocation2 + $0x40] sm:$0x1]
        %s429 = scalar_lea.vmem %s268, 2
        %v430 = vld [vmem:[%s429] sm:$0x3]
        %vm431 = vsmask.f32 7424
        %v433 = vshrl.u32 %v419, 16
        %v435 = vshll.u32 %v419, 16
        %v437 = vrot.slane %v435, 1
        %v438 = vor.u32 %v433, %v437
        %v440 = vshll.u32 %v420, 16
        %v442 = vrot.slane %v440, 1
        %v443 = vsel %vm431, %v438, %v442
        %v444 = vshrl.u32 %v420, 16
        %v446 = vor.u32 %v444, %v442
        %v448 = vshll.u32 %v421, 16
        %v450 = vrot.slane %v448, 1
        %v451 = vsel %vm431, %v446, %v450
        %v452 = vshrl.u32 %v421, 16
        %v454 = vor.u32 %v452, %v450
        %v456 = vshll.u32 %v422, 16
        %v458 = vrot.slane %v456, 1
        %v459 = vsel %vm431, %v454, %v458
        %v460 = vshrl.u32 %v422, 16
        %v462 = vor.u32 %v460, %v458
        %v464 = vshll.u32 %v423, 16
        %v466 = vrot.slane %v464, 1
        %v467 = vsel %vm431, %v462, %v466
        %v468 = vshrl.u32 %v423, 16
        %v470 = vor.u32 %v468, %v466
        %v472 = vshll.u32 %v424, 16
        %v474 = vrot.slane %v472, 1
        %v475 = vsel %vm431, %v470, %v474
        %v476 = vshrl.u32 %v424, 16
        %v478 = vor.u32 %v476, %v474
        %v480 = vshll.u32 %v425, 16
        %v482 = vrot.slane %v480, 1
        %v483 = vsel %vm431, %v478, %v482
        %v484 = vshrl.u32 %v425, 16
        %v486 = vor.u32 %v484, %v482
        %v488 = vshll.u32 %v426, 16
        %v490 = vrot.slane %v488, 1
        %v491 = vsel %vm431, %v486, %v490
        %v492 = vshrl.u32 %v426, 16
        %v494 = vor.u32 %v492, %v490
        %v496 = vshll.u32 %v428, 16
        %v498 = vrot.slane %v496, 1
        %v499 = vsel %vm431, %v494, %v498
        %v501 = vsel %vm338, %v443, 0
        %v504 = vsel %vm338, %v451, 0
        %v507 = vsel %vm338, %v459, 0
        %v510 = vsel %vm338, %v467, 0
        %v513 = vsel %vm338, %v475, 0
        %v516 = vsel %vm338, %v483, 0
        %v519 = vsel %vm338, %v491, 0
        %v522 = vsel %vm338, %v499, 0
        %vm524 = vcmask 1041408
        %v526 = vsel %vm524, %v430, 0
        %528 = vmatprep.subr.bf16.mxu0 0
        %529 = vmatpush1.bf16.msra.mxu0 %v526
        %530 = vmatprep.subr.bf16.mxu0 0
        %531 = vmatpush1.bf16.msra.mxu0 0
        %532 = vmatprep.subr.bf16.mxu0 0
        %533 = vmatpush1.bf16.msra.mxu0 0
        %534 = vmatprep.subr.bf16.mxu0 0
        %535 = vmatpush1.bf16.msra.mxu0 0
        %536 = vmatprep.subr.bf16.mxu0 0
        %537 = vmatpush1.bf16.msra.mxu0 0
        %538 = vmatprep.subr.bf16.mxu0 0
        %539 = vmatpush1.bf16.msra.mxu0 0
        %540 = vmatprep.subr.bf16.mxu0 0
        %541 = vmatpush1.bf16.msra.mxu0 0
        %542 = vmatprep.subr.bf16.mxu0 0
        %543 = vmatpush1.bf16.msra.mxu0 0
        %544 = vmatprep.subr.bf16.mxu0 0
        %545 = vmatpush1.bf16.msra.mxu0 0
        %546 = vmatprep.subr.bf16.mxu0 0
        %547 = vmatpush1.bf16.msra.mxu0 0
        %548 = vmatprep.subr.bf16.mxu0 0
        %549 = vmatpush1.bf16.msra.mxu0 0
        %550 = vmatprep.subr.bf16.mxu0 0
        %551 = vmatpush1.bf16.msra.mxu0 0
        %552 = vmatprep.subr.bf16.mxu0 0
        %553 = vmatpush1.bf16.msra.mxu0 0
        %554 = vmatprep.subr.bf16.mxu0 0
        %555 = vmatpush1.bf16.msra.mxu0 0
        %556 = vmatprep.subr.bf16.mxu0 0
        %557 = vmatpush1.bf16.msra.mxu0 0
        %558 = vmatprep.subr.bf16.mxu0 0
        %559 = vmatpush1.bf16.msra.mxu0 0
        %560 = vmatprep.mubr.bf16.mxu0 0
        %561 = vmatmul.mubr.bf16.gmra.mrb[0].mxu0 %v501
        %v562 = vpop.f32.mrb[0].mxu0
        %v563 = vadd.f32 0.0, %v562
        %v564 = vpop.f32.mrb[0].mxu0
        %v565 = vpop.f32.mrb[0].mxu0
        %v566 = vadd.f32 0.0, %v565
        %v567 = vpop.f32.mrb[0].mxu0
        %568 = vmatprep.mubr.bf16.mxu0 0
        %569 = vmatmul.mubr.bf16.gmra.mrb[0].mxu0 %v504
        %v570 = vpop.f32.mrb[0].mxu0
        %v571 = vadd.f32 0.0, %v570
        %v572 = vpop.f32.mrb[0].mxu0
        %v573 = vpop.f32.mrb[0].mxu0
        %v574 = vadd.f32 0.0, %v573
        %v575 = vpop.f32.mrb[0].mxu0
        %576 = vmatprep.mubr.bf16.mxu0 0
        %577 = vmatmul.mubr.bf16.gmra.mrb[0].mxu0 %v507
        %v578 = vpop.f32.mrb[0].mxu0
        %v579 = vadd.f32 0.0, %v578
        %v580 = vpop.f32.mrb[0].mxu0
        %v581 = vpop.f32.mrb[0].mxu0
        %v582 = vadd.f32 0.0, %v581
        %v583 = vpop.f32.mrb[0].mxu0
        %584 = vmatprep.mubr.bf16.mxu0 0
        %585 = vmatmul.mubr.bf16.gmra.mrb[0].mxu0 %v510
        %v586 = vpop.f32.mrb[0].mxu0
        %v587 = vadd.f32 0.0, %v586
        %v588 = vpop.f32.mrb[0].mxu0
        %v589 = vpop.f32.mrb[0].mxu0
        %v590 = vadd.f32 0.0, %v589
        %v591 = vpop.f32.mrb[0].mxu0
        %592 = vmatprep.mubr.bf16.mxu0 0
        %593 = vmatmul.mubr.bf16.gmra.mrb[0].mxu0 %v513
        %v594 = vpop.f32.mrb[0].mxu0
        %v595 = vadd.f32 0.0, %v594
        %v596 = vpop.f32.mrb[0].mxu0
        %v597 = vpop.f32.mrb[0].mxu0
        %v598 = vadd.f32 0.0, %v597
        %v599 = vpop.f32.mrb[0].mxu0
        %600 = vmatprep.mubr.bf16.mxu0 0
        %601 = vmatmul.mubr.bf16.gmra.mrb[0].mxu0 %v516
        %v602 = vpop.f32.mrb[0].mxu0
        %v603 = vadd.f32 0.0, %v602
        %v604 = vpop.f32.mrb[0].mxu0
        %v605 = vpop.f32.mrb[0].mxu0
        %v606 = vadd.f32 0.0, %v605
        %v607 = vpop.f32.mrb[0].mxu0
        %608 = vmatprep.mubr.bf16.mxu0 0
        %609 = vmatmul.mubr.bf16.gmra.mrb[0].mxu0 %v519
        %v610 = vpop.f32.mrb[0].mxu0
        %v611 = vadd.f32 0.0, %v610
        %v612 = vpop.f32.mrb[0].mxu0
        %v613 = vpop.f32.mrb[0].mxu0
        %v614 = vadd.f32 0.0, %v613
        %v615 = vpop.f32.mrb[0].mxu0
        %616 = vmatprep.mubr.bf16.mxu0 0
        %617 = vmatmul.mubr.bf16.gmra.mrb[0].mxu0 %v522
        %v618 = vpop.f32.mrb[0].mxu0
        %v619 = vadd.f32 0.0, %v618
        %v620 = vpop.f32.mrb[0].mxu0
        %v621 = vpop.f32.mrb[0].mxu0
        %v622 = vadd.f32 0.0, %v621
        %v623 = vpop.f32.mrb[0].mxu0
        %624 = vdwg.mxu0
        %v625 = vsel %vm338, %v419, 0
        %v627 = vsel %vm338, %v420, 0
        %v629 = vsel %vm338, %v421, 0
        %v631 = vsel %vm338, %v422, 0
        %v633 = vsel %vm338, %v423, 0
        %v635 = vsel %vm338, %v424, 0
        %v637 = vsel %vm338, %v425, 0
        %v639 = vsel %vm338, %v426, 0
        %v642 = vsel %vm524, %v427, 0
        %644 = vmatprep.subr.bf16.mxu0 0
        %645 = vmatpush1.bf16.msra.mxu0 %v642
        %646 = vmatprep.subr.bf16.mxu0 0
        %647 = vmatpush1.bf16.msra.mxu0 0
        %648 = vmatprep.subr.bf16.mxu0 0
        %649 = vmatpush1.bf16.msra.mxu0 0
        %650 = vmatprep.subr.bf16.mxu0 0
        %651 = vmatpush1.bf16.msra.mxu0 0
        %652 = vmatprep.subr.bf16.mxu0 0
        %653 = vmatpush1.bf16.msra.mxu0 0
        %654 = vmatprep.subr.bf16.mxu0 0
        %655 = vmatpush1.bf16.msra.mxu0 0
        %656 = vmatprep.subr.bf16.mxu0 0
        %657 = vmatpush1.bf16.msra.mxu0 0
        %658 = vmatprep.subr.bf16.mxu0 0
        %659 = vmatpush1.bf16.msra.mxu0 0
        %660 = vmatprep.subr.bf16.mxu0 0
        %661 = vmatpush1.bf16.msra.mxu0 0
        %662 = vmatprep.subr.bf16.mxu0 0
        %663 = vmatpush1.bf16.msra.mxu0 0
        %664 = vmatprep.subr.bf16.mxu0 0
        %665 = vmatpush1.bf16.msra.mxu0 0
        %666 = vmatprep.subr.bf16.mxu0 0
        %667 = vmatpush1.bf16.msra.mxu0 0
        %668 = vmatprep.subr.bf16.mxu0 0
        %669 = vmatpush1.bf16.msra.mxu0 0
        %670 = vmatprep.subr.bf16.mxu0 0
        %671 = vmatpush1.bf16.msra.mxu0 0
        %672 = vmatprep.subr.bf16.mxu0 0
        %673 = vmatpush1.bf16.msra.mxu0 0
        %674 = vmatprep.subr.bf16.mxu0 0
        %675 = vmatpush1.bf16.msra.mxu0 0
        %676 = vmatprep.mubr.bf16.mxu0 0
        %677 = vmatmul.mubr.bf16.gmra.mrb[0].mxu0 %v625
        %v678 = vpop.f32.mrb[0].mxu0
        %v679 = vadd.f32 %v563, %v678
        %v680 = vpop.f32.mrb[0].mxu0
        %v681 = vpop.f32.mrb[0].mxu0
        %v682 = vadd.f32 %v566, %v681
        %v683 = vpop.f32.mrb[0].mxu0
        %684 = vmatprep.mubr.bf16.mxu0 0
        %685 = vmatmul.mubr.bf16.gmra.mrb[0].mxu0 %v627
        %v686 = vpop.f32.mrb[0].mxu0
        %v687 = vadd.f32 %v571, %v686
        %v688 = vpop.f32.mrb[0].mxu0
        %v689 = vpop.f32.mrb[0].mxu0
        %v690 = vadd.f32 %v574, %v689
        %v691 = vpop.f32.mrb[0].mxu0
        %692 = vmatprep.mubr.bf16.mxu0 0
        %693 = vmatmul.mubr.bf16.gmra.mrb[0].mxu0 %v629
        %v694 = vpop.f32.mrb[0].mxu0
        %v695 = vadd.f32 %v579, %v694
        %v696 = vpop.f32.mrb[0].mxu0
        %v697 = vpop.f32.mrb[0].mxu0
        %v698 = vadd.f32 %v582, %v697
        %v699 = vpop.f32.mrb[0].mxu0
        %700 = vmatprep.mubr.bf16.mxu0 0
        %701 = vmatmul.mubr.bf16.gmra.mrb[0].mxu0 %v631
        %v702 = vpop.f32.mrb[0].mxu0
        %v703 = vadd.f32 %v587, %v702
        %v704 = vpop.f32.mrb[0].mxu0
        %v705 = vpop.f32.mrb[0].mxu0
        %v706 = vadd.f32 %v590, %v705
        %v707 = vpop.f32.mrb[0].mxu0
        %708 = vmatprep.mubr.bf16.mxu0 0
        %709 = vmatmul.mubr.bf16.gmra.mrb[0].mxu0 %v633
        %v710 = vpop.f32.mrb[0].mxu0
        %v711 = vadd.f32 %v595, %v710
        %v712 = vpop.f32.mrb[0].mxu0
        %v713 = vpop.f32.mrb[0].mxu0
        %v714 = vadd.f32 %v598, %v713
        %v715 = vpop.f32.mrb[0].mxu0
        %716 = vmatprep.mubr.bf16.mxu0 0
        %717 = vmatmul.mubr.bf16.gmra.mrb[0].mxu0 %v635
        %v718 = vpop.f32.mrb[0].mxu0
        %v719 = vadd.f32 %v603, %v718
        %v720 = vpop.f32.mrb[0].mxu0
        %v721 = vpop.f32.mrb[0].mxu0
        %v722 = vadd.f32 %v606, %v721
        %v723 = vpop.f32.mrb[0].mxu0
        %724 = vmatprep.mubr.bf16.mxu0 0
        %725 = vmatmul.mubr.bf16.gmra.mrb[0].mxu0 %v637
        %v726 = vpop.f32.mrb[0].mxu0
        %v727 = vadd.f32 %v611, %v726
        %v728 = vpop.f32.mrb[0].mxu0
        %v729 = vpop.f32.mrb[0].mxu0
        %v730 = vadd.f32 %v614, %v729
        %v731 = vpop.f32.mrb[0].mxu0
        %732 = vmatprep.mubr.bf16.mxu0 0
        %733 = vmatmul.mubr.bf16.gmra.mrb[0].mxu0 %v639
        %v734 = vpop.f32.mrb[0].mxu0
        %v735 = vadd.f32 %v619, %v734
        %v736 = vpop.f32.mrb[0].mxu0
        %v737 = vpop.f32.mrb[0].mxu0
        %v738 = vadd.f32 %v622, %v737
        %v739 = vpop.f32.mrb[0].mxu0
        %740 = vdwg.mxu0
        %v741 = vld [vmem:[#allocation2] sm:$0xfe]
        %s742 = scalar_lea.vmem %s268, 4
        %v743 = vld [vmem:[%s742] sm:$0x3]
        %vm753 = vcmask 1046528
        %v754 = vrot.slane %v741, 1
        %v755 = vrot.slane %v420, 1
        %v756 = vsel %vm753, %v754, %v755
        %v757 = vrot.slane %v421, 1
        %v758 = vsel %vm753, %v755, %v757
        %v759 = vrot.slane %v422, 1
        %v760 = vsel %vm753, %v757, %v759
        %v761 = vrot.slane %v423, 1
        %v762 = vsel %vm753, %v759, %v761
        %v763 = vrot.slane %v424, 1
        %v764 = vsel %vm753, %v761, %v763
        %v765 = vrot.slane %v425, 1
        %v766 = vsel %vm753, %v763, %v765
        %v767 = vrot.slane %v426, 1
        %v768 = vsel %vm753, %v765, %v767
        %v769 = vrot.slane %v428, 1
        %v770 = vsel %vm753, %v767, %v769
        %v772 = vsel %vm338, %v756, 0
        %v775 = vsel %vm338, %v758, 0
        %v778 = vsel %vm338, %v760, 0
        %v781 = vsel %vm338, %v762, 0
        %v784 = vsel %vm338, %v764, 0
        %v787 = vsel %vm338, %v766, 0
        %v790 = vsel %vm338, %v768, 0
        %v793 = vsel %vm338, %v770, 0
        %v796 = vsel %vm524, %v743, 0
        %798 = vmatprep.subr.bf16.mxu0 0
        %799 = vmatpush1.bf16.msra.mxu0 %v796
        %800 = vmatprep.subr.bf16.mxu0 0
        %801 = vmatpush1.bf16.msra.mxu0 0
        %802 = vmatprep.subr.bf16.mxu0 0
        %803 = vmatpush1.bf16.msra.mxu0 0
        %804 = vmatprep.subr.bf16.mxu0 0
        %805 = vmatpush1.bf16.msra.mxu0 0
        %806 = vmatprep.subr.bf16.mxu0 0
        %807 = vmatpush1.bf16.msra.mxu0 0
        %808 = vmatprep.subr.bf16.mxu0 0
        %809 = vmatpush1.bf16.msra.mxu0 0
        %810 = vmatprep.subr.bf16.mxu0 0
        %811 = vmatpush1.bf16.msra.mxu0 0
        %812 = vmatprep.subr.bf16.mxu0 0
        %813 = vmatpush1.bf16.msra.mxu0 0
        %814 = vmatprep.subr.bf16.mxu0 0
        %815 = vmatpush1.bf16.msra.mxu0 0
        %816 = vmatprep.subr.bf16.mxu0 0
        %817 = vmatpush1.bf16.msra.mxu0 0
        %818 = vmatprep.subr.bf16.mxu0 0
        %819 = vmatpush1.bf16.msra.mxu0 0
        %820 = vmatprep.subr.bf16.mxu0 0
        %821 = vmatpush1.bf16.msra.mxu0 0
        %822 = vmatprep.subr.bf16.mxu0 0
        %823 = vmatpush1.bf16.msra.mxu0 0
        %824 = vmatprep.subr.bf16.mxu0 0
        %825 = vmatpush1.bf16.msra.mxu0 0
        %826 = vmatprep.subr.bf16.mxu0 0
        %827 = vmatpush1.bf16.msra.mxu0 0
        %828 = vmatprep.subr.bf16.mxu0 0
        %829 = vmatpush1.bf16.msra.mxu0 0
        %830 = vmatprep.mubr.bf16.mxu0 0
        %831 = vmatmul.mubr.bf16.gmra.mrb[0].mxu0 %v772
        %v832 = vpop.f32.mrb[0].mxu0
        %v833 = vadd.f32 0.0, %v832
        %v834 = vpop.f32.mrb[0].mxu0
        %v835 = vpop.f32.mrb[0].mxu0
        %v836 = vadd.f32 0.0, %v835
        %v837 = vpop.f32.mrb[0].mxu0
        %838 = vmatprep.mubr.bf16.mxu0 0
        %839 = vmatmul.mubr.bf16.gmra.mrb[0].mxu0 %v775
        %v840 = vpop.f32.mrb[0].mxu0
        %v841 = vadd.f32 0.0, %v840
        %v842 = vpop.f32.mrb[0].mxu0
        %v843 = vpop.f32.mrb[0].mxu0
        %v844 = vadd.f32 0.0, %v843
        %v845 = vpop.f32.mrb[0].mxu0
        %846 = vmatprep.mubr.bf16.mxu0 0
        %847 = vmatmul.mubr.bf16.gmra.mrb[0].mxu0 %v778
        %v848 = vpop.f32.mrb[0].mxu0
        %v849 = vadd.f32 0.0, %v848
        %v850 = vpop.f32.mrb[0].mxu0
        %v851 = vpop.f32.mrb[0].mxu0
        %v852 = vadd.f32 0.0, %v851
        %v853 = vpop.f32.mrb[0].mxu0
        %854 = vmatprep.mubr.bf16.mxu0 0
        %855 = vmatmul.mubr.bf16.gmra.mrb[0].mxu0 %v781
        %v856 = vpop.f32.mrb[0].mxu0
        %v857 = vadd.f32 0.0, %v856
        %v858 = vpop.f32.mrb[0].mxu0
        %v859 = vpop.f32.mrb[0].mxu0
        %v860 = vadd.f32 0.0, %v859
        %v861 = vpop.f32.mrb[0].mxu0
        %862 = vmatprep.mubr.bf16.mxu0 0
        %863 = vmatmul.mubr.bf16.gmra.mrb[0].mxu0 %v784
        %v864 = vpop.f32.mrb[0].mxu0
        %v865 = vadd.f32 0.0, %v864
        %v866 = vpop.f32.mrb[0].mxu0
        %v867 = vpop.f32.mrb[0].mxu0
        %v868 = vadd.f32 0.0, %v867
        %v869 = vpop.f32.mrb[0].mxu0
        %870 = vmatprep.mubr.bf16.mxu0 0
        %871 = vmatmul.mubr.bf16.gmra.mrb[0].mxu0 %v787
        %v872 = vpop.f32.mrb[0].mxu0
        %v873 = vadd.f32 0.0, %v872
        %v874 = vpop.f32.mrb[0].mxu0
        %v875 = vpop.f32.mrb[0].mxu0
        %v876 = vadd.f32 0.0, %v875
        %v877 = vpop.f32.mrb[0].mxu0
        %878 = vmatprep.mubr.bf16.mxu0 0
        %879 = vmatmul.mubr.bf16.gmra.mrb[0].mxu0 %v790
        %v880 = vpop.f32.mrb[0].mxu0
        %v881 = vadd.f32 0.0, %v880
        %v882 = vpop.f32.mrb[0].mxu0
        %v883 = vpop.f32.mrb[0].mxu0
        %v884 = vadd.f32 0.0, %v883
        %v885 = vpop.f32.mrb[0].mxu0
        %886 = vmatprep.mubr.bf16.mxu0 0
        %887 = vmatmul.mubr.bf16.gmra.mrb[0].mxu0 %v793
        %v888 = vpop.f32.mrb[0].mxu0
        %v889 = vadd.f32 0.0, %v888
        %v890 = vpop.f32.mrb[0].mxu0
        %v891 = vpop.f32.mrb[0].mxu0
        %v892 = vadd.f32 0.0, %v891
        %v893 = vpop.f32.mrb[0].mxu0
        %894 = vdwg.mxu0
        %v895 = vadd.f32 %v679, %v833
        %v896 = vadd.f32 %v682, %v836
        %v897 = vadd.f32 %v687, %v841
        %v898 = vadd.f32 %v690, %v844
        %v899 = vadd.f32 %v695, %v849
        %v900 = vadd.f32 %v698, %v852
        %v901 = vadd.f32 %v703, %v857
        %v902 = vadd.f32 %v706, %v860
        %v903 = vadd.f32 %v711, %v865
        %v904 = vadd.f32 %v714, %v868
        %v905 = vadd.f32 %v719, %v873
        %v906 = vadd.f32 %v722, %v876
        %v907 = vadd.f32 %v727, %v881
        %v908 = vadd.f32 %v730, %v884
        %v909 = vadd.f32 %v735, %v889
        %v910 = vadd.f32 %v738, %v892
        %v911 = vld [vmem:[#allocation2 + $0x8] sm:$0xfe]
        %v912 = vld [vmem:[#allocation2 + $0x10] sm:$0xff]
        %v913 = vld [vmem:[#allocation2 + $0x18] sm:$0xff]
        %v914 = vld [vmem:[#allocation2 + $0x20] sm:$0xff]
        %v915 = vld [vmem:[#allocation2 + $0x28] sm:$0xff]
        %v916 = vld [vmem:[#allocation2 + $0x30] sm:$0xff]
        %v917 = vld [vmem:[#allocation2 + $0x38] sm:$0xff]
        %v918 = vld [vmem:[#allocation2 + $0x40] sm:$0xff]
        %v919 = vld [vmem:[#allocation2 + $0x48] sm:$0x1]
        %s920 = scalar_lea.vmem %s268, 6
        %v921 = vld [vmem:[%s920] sm:$0x3]
        %v931 = vrot.slane %v911, 1
        %v932 = vrot.slane %v912, 1
        %v933 = vsel %vm753, %v931, %v932
        %v934 = vrot.slane %v913, 1
        %v935 = vsel %vm753, %v932, %v934
        %v936 = vrot.slane %v914, 1
        %v937 = vsel %vm753, %v934, %v936
        %v938 = vrot.slane %v915, 1
        %v939 = vsel %vm753, %v936, %v938
        %v940 = vrot.slane %v916, 1
        %v941 = vsel %vm753, %v938, %v940
        %v942 = vrot.slane %v917, 1
        %v943 = vsel %vm753, %v940, %v942
        %v944 = vrot.slane %v918, 1
        %v945 = vsel %vm753, %v942, %v944
        %v946 = vrot.slane %v919, 1
        %v947 = vsel %vm753, %v944, %v946
        %v949 = vsel %vm338, %v933, 0
        %v952 = vsel %vm338, %v935, 0
        %v955 = vsel %vm338, %v937, 0
        %v958 = vsel %vm338, %v939, 0
        %v961 = vsel %vm338, %v941, 0
        %v964 = vsel %vm338, %v943, 0
        %v967 = vsel %vm338, %v945, 0
        %v970 = vsel %vm338, %v947, 0
        %v973 = vsel %vm524, %v921, 0
        %975 = vmatprep.subr.bf16.mxu0 0
        %976 = vmatpush1.bf16.msra.mxu0 %v973
        %977 = vmatprep.subr.bf16.mxu0 0
        %978 = vmatpush1.bf16.msra.mxu0 0
        %979 = vmatprep.subr.bf16.mxu0 0
        %980 = vmatpush1.bf16.msra.mxu0 0
        %981 = vmatprep.subr.bf16.mxu0 0
        %982 = vmatpush1.bf16.msra.mxu0 0
        %983 = vmatprep.subr.bf16.mxu0 0
        %984 = vmatpush1.bf16.msra.mxu0 0
        %985 = vmatprep.subr.bf16.mxu0 0
        %986 = vmatpush1.bf16.msra.mxu0 0
        %987 = vmatprep.subr.bf16.mxu0 0
        %988 = vmatpush1.bf16.msra.mxu0 0
        %989 = vmatprep.subr.bf16.mxu0 0
        %990 = vmatpush1.bf16.msra.mxu0 0
        %991 = vmatprep.subr.bf16.mxu0 0
        %992 = vmatpush1.bf16.msra.mxu0 0
        %993 = vmatprep.subr.bf16.mxu0 0
        %994 = vmatpush1.bf16.msra.mxu0 0
        %995 = vmatprep.subr.bf16.mxu0 0
        %996 = vmatpush1.bf16.msra.mxu0 0
        %997 = vmatprep.subr.bf16.mxu0 0
        %998 = vmatpush1.bf16.msra.mxu0 0
        %999 = vmatprep.subr.bf16.mxu0 0
        %1000 = vmatpush1.bf16.msra.mxu0 0
        %1001 = vmatprep.subr.bf16.mxu0 0
        %1002 = vmatpush1.bf16.msra.mxu0 0
        %1003 = vmatprep.subr.bf16.mxu0 0
        %1004 = vmatpush1.bf16.msra.mxu0 0
        %1005 = vmatprep.subr.bf16.mxu0 0
        %1006 = vmatpush1.bf16.msra.mxu0 0
        %1007 = vmatprep.mubr.bf16.mxu0 0
        %1008 = vmatmul.mubr.bf16.gmra.mrb[0].mxu0 %v949
        %v1009 = vpop.f32.mrb[0].mxu0
        %v1010 = vadd.f32 0.0, %v1009
        %v1011 = vpop.f32.mrb[0].mxu0
        %v1012 = vpop.f32.mrb[0].mxu0
        %v1013 = vadd.f32 0.0, %v1012
        %v1014 = vpop.f32.mrb[0].mxu0
        %1015 = vmatprep.mubr.bf16.mxu0 0
        %1016 = vmatmul.mubr.bf16.gmra.mrb[0].mxu0 %v952
        %v1017 = vpop.f32.mrb[0].mxu0
        %v1018 = vadd.f32 0.0, %v1017
        %v1019 = vpop.f32.mrb[0].mxu0
        %v1020 = vpop.f32.mrb[0].mxu0
        %v1021 = vadd.f32 0.0, %v1020
        %v1022 = vpop.f32.mrb[0].mxu0
        %1023 = vmatprep.mubr.bf16.mxu0 0
        %1024 = vmatmul.mubr.bf16.gmra.mrb[0].mxu0 %v955
        %v1025 = vpop.f32.mrb[0].mxu0
        %v1026 = vadd.f32 0.0, %v1025
        %v1027 = vpop.f32.mrb[0].mxu0
        %v1028 = vpop.f32.mrb[0].mxu0
        %v1029 = vadd.f32 0.0, %v1028
        %v1030 = vpop.f32.mrb[0].mxu0
        %1031 = vmatprep.mubr.bf16.mxu0 0
        %1032 = vmatmul.mubr.bf16.gmra.mrb[0].mxu0 %v958
        %v1033 = vpop.f32.mrb[0].mxu0
        %v1034 = vadd.f32 0.0, %v1033
        %v1035 = vpop.f32.mrb[0].mxu0
        %v1036 = vpop.f32.mrb[0].mxu0
        %v1037 = vadd.f32 0.0, %v1036
        %v1038 = vpop.f32.mrb[0].mxu0
        %1039 = vmatprep.mubr.bf16.mxu0 0
        %1040 = vmatmul.mubr.bf16.gmra.mrb[0].mxu0 %v961
        %v1041 = vpop.f32.mrb[0].mxu0
        %v1042 = vadd.f32 0.0, %v1041
        %v1043 = vpop.f32.mrb[0].mxu0
        %v1044 = vpop.f32.mrb[0].mxu0
        %v1045 = vadd.f32 0.0, %v1044
        %v1046 = vpop.f32.mrb[0].mxu0
        %1047 = vmatprep.mubr.bf16.mxu0 0
        %1048 = vmatmul.mubr.bf16.gmra.mrb[0].mxu0 %v964
        %v1049 = vpop.f32.mrb[0].mxu0
        %v1050 = vadd.f32 0.0, %v1049
        %v1051 = vpop.f32.mrb[0].mxu0
        %v1052 = vpop.f32.mrb[0].mxu0
        %v1053 = vadd.f32 0.0, %v1052
        %v1054 = vpop.f32.mrb[0].mxu0
        %1055 = vmatprep.mubr.bf16.mxu0 0
        %1056 = vmatmul.mubr.bf16.gmra.mrb[0].mxu0 %v967
        %v1057 = vpop.f32.mrb[0].mxu0
        %v1058 = vadd.f32 0.0, %v1057
        %v1059 = vpop.f32.mrb[0].mxu0
        %v1060 = vpop.f32.mrb[0].mxu0
        %v1061 = vadd.f32 0.0, %v1060
        %v1062 = vpop.f32.mrb[0].mxu0
        %1063 = vmatprep.mubr.bf16.mxu0 0
        %1064 = vmatmul.mubr.bf16.gmra.mrb[0].mxu0 %v970
        %v1065 = vpop.f32.mrb[0].mxu0
        %v1066 = vadd.f32 0.0, %v1065
        %v1067 = vpop.f32.mrb[0].mxu0
        %v1068 = vpop.f32.mrb[0].mxu0
        %v1069 = vadd.f32 0.0, %v1068
        %v1070 = vpop.f32.mrb[0].mxu0
        %1071 = vdwg.mxu0
        %v1072 = vadd.f32 %v895, %v1010
        %v1073 = vadd.f32 %v896, %v1013
        %v1074 = vadd.f32 %v897, %v1018
        %v1075 = vadd.f32 %v898, %v1021
        %v1076 = vadd.f32 %v899, %v1026
        %v1077 = vadd.f32 %v900, %v1029
        %v1078 = vadd.f32 %v901, %v1034
        %v1079 = vadd.f32 %v902, %v1037
        %v1080 = vadd.f32 %v903, %v1042
        %v1081 = vadd.f32 %v904, %v1045
        %v1082 = vadd.f32 %v905, %v1050
        %v1083 = vadd.f32 %v906, %v1053
        %v1084 = vadd.f32 %v907, %v1058
        %v1085 = vadd.f32 %v908, %v1061
        %v1086 = vadd.f32 %v909, %v1066
        %v1087 = vadd.f32 %v910, %v1069
        %v1088 = vld [vmem:[#allocation2 + $0x48] sm:$0x3]
        %s1089 = scalar_lea.vmem %s268, 8
        %v1090 = vld [vmem:[%s1089] sm:$0x3]
        %vm1091 = vsmask.f32 6400
        %v1093 = vshrl.u32 %v911, 16
        %v1095 = vrot.slane %v1093, 1
        %v1096 = vshll.u32 %v911, 16
        %v1098 = vrot.slane %v1096, 2
        %v1099 = vor.u32 %v1095, %v1098
        %v1101 = vshrl.u32 %v912, 16
        %v1103 = vrot.slane %v1101, 1
        %v1104 = vshll.u32 %v912, 16
        %v1106 = vrot.slane %v1104, 2
        %v1107 = vor.u32 %v1103, %v1106
        %v1108 = vsel %vm1091, %v1099, %v1107
        %v1110 = vshrl.u32 %v913, 16
        %v1112 = vrot.slane %v1110, 1
        %v1113 = vshll.u32 %v913, 16
        %v1115 = vrot.slane %v1113, 2
        %v1116 = vor.u32 %v1112, %v1115
        %v1117 = vsel %vm1091, %v1107, %v1116
        %v1119 = vshrl.u32 %v914, 16
        %v1121 = vrot.slane %v1119, 1
        %v1122 = vshll.u32 %v914, 16
        %v1124 = vrot.slane %v1122, 2
        %v1125 = vor.u32 %v1121, %v1124
        %v1126 = vsel %vm1091, %v1116, %v1125
        %v1128 = vshrl.u32 %v915, 16
        %v1130 = vrot.slane %v1128, 1
        %v1131 = vshll.u32 %v915, 16
        %v1133 = vrot.slane %v1131, 2
        %v1134 = vor.u32 %v1130, %v1133
        %v1135 = vsel %vm1091, %v1125, %v1134
        %v1137 = vshrl.u32 %v916, 16
        %v1139 = vrot.slane %v1137, 1
        %v1140 = vshll.u32 %v916, 16
        %v1142 = vrot.slane %v1140, 2
        %v1143 = vor.u32 %v1139, %v1142
        %v1144 = vsel %vm1091, %v1134, %v1143
        %v1146 = vshrl.u32 %v917, 16
        %v1148 = vrot.slane %v1146, 1
        %v1149 = vshll.u32 %v917, 16
        %v1151 = vrot.slane %v1149, 2
        %v1152 = vor.u32 %v1148, %v1151
        %v1153 = vsel %vm1091, %v1143, %v1152
        %v1155 = vshrl.u32 %v918, 16
        %v1157 = vrot.slane %v1155, 1
        %v1158 = vshll.u32 %v918, 16
        %v1160 = vrot.slane %v1158, 2
        %v1161 = vor.u32 %v1157, %v1160
        %v1162 = vsel %vm1091, %v1152, %v1161
        %v1164 = vshrl.u32 %v1088, 16
        %v1166 = vrot.slane %v1164, 1
        %v1167 = vshll.u32 %v1088, 16
        %v1169 = vrot.slane %v1167, 2
        %v1170 = vor.u32 %v1166, %v1169
        %v1171 = vsel %vm1091, %v1161, %v1170
        %v1173 = vsel %vm338, %v1108, 0
        %v1176 = vsel %vm338, %v1117, 0
        %v1179 = vsel %vm338, %v1126, 0
        %v1182 = vsel %vm338, %v1135, 0
        %v1185 = vsel %vm338, %v1144, 0
        %v1188 = vsel %vm338, %v1153, 0
        %v1191 = vsel %vm338, %v1162, 0
        %v1194 = vsel %vm338, %v1171, 0
        %v1197 = vsel %vm524, %v1090, 0
        %1199 = vmatprep.subr.bf16.mxu0 0
        %1200 = vmatpush1.bf16.msra.mxu0 %v1197
        %1201 = vmatprep.subr.bf16.mxu0 0
        %1202 = vmatpush1.bf16.msra.mxu0 0
        %1203 = vmatprep.subr.bf16.mxu0 0
        %1204 = vmatpush1.bf16.msra.mxu0 0
        %1205 = vmatprep.subr.bf16.mxu0 0
        %1206 = vmatpush1.bf16.msra.mxu0 0
        %1207 = vmatprep.subr.bf16.mxu0 0
        %1208 = vmatpush1.bf16.msra.mxu0 0
        %1209 = vmatprep.subr.bf16.mxu0 0
        %1210 = vmatpush1.bf16.msra.mxu0 0
        %1211 = vmatprep.subr.bf16.mxu0 0
        %1212 = vmatpush1.bf16.msra.mxu0 0
        %1213 = vmatprep.subr.bf16.mxu0 0
        %1214 = vmatpush1.bf16.msra.mxu0 0
        %1215 = vmatprep.subr.bf16.mxu0 0
        %1216 = vmatpush1.bf16.msra.mxu0 0
        %1217 = vmatprep.subr.bf16.mxu0 0
        %1218 = vmatpush1.bf16.msra.mxu0 0
        %1219 = vmatprep.subr.bf16.mxu0 0
        %1220 = vmatpush1.bf16.msra.mxu0 0
        %1221 = vmatprep.subr.bf16.mxu0 0
        %1222 = vmatpush1.bf16.msra.mxu0 0
        %1223 = vmatprep.subr.bf16.mxu0 0
        %1224 = vmatpush1.bf16.msra.mxu0 0
        %1225 = vmatprep.subr.bf16.mxu0 0
        %1226 = vmatpush1.bf16.msra.mxu0 0
        %1227 = vmatprep.subr.bf16.mxu0 0
        %1228 = vmatpush1.bf16.msra.mxu0 0
        %1229 = vmatprep.subr.bf16.mxu0 0
        %1230 = vmatpush1.bf16.msra.mxu0 0
        %1231 = vmatprep.mubr.bf16.mxu0 0
        %1232 = vmatmul.mubr.bf16.gmra.mrb[0].mxu0 %v1173
        %v1233 = vpop.f32.mrb[0].mxu0
        %v1234 = vadd.f32 0.0, %v1233
        %v1235 = vpop.f32.mrb[0].mxu0
        %v1236 = vpop.f32.mrb[0].mxu0
        %v1237 = vadd.f32 0.0, %v1236
        %v1238 = vpop.f32.mrb[0].mxu0
        %1239 = vmatprep.mubr.bf16.mxu0 0
        %1240 = vmatmul.mubr.bf16.gmra.mrb[0].mxu0 %v1176
        %v1241 = vpop.f32.mrb[0].mxu0
        %v1242 = vadd.f32 0.0, %v1241
        %v1243 = vpop.f32.mrb[0].mxu0
        %v1244 = vpop.f32.mrb[0].mxu0
        %v1245 = vadd.f32 0.0, %v1244
        %v1246 = vpop.f32.mrb[0].mxu0
        %1247 = vmatprep.mubr.bf16.mxu0 0
        %1248 = vmatmul.mubr.bf16.gmra.mrb[0].mxu0 %v1179
        %v1249 = vpop.f32.mrb[0].mxu0
        %v1250 = vadd.f32 0.0, %v1249
        %v1251 = vpop.f32.mrb[0].mxu0
        %v1252 = vpop.f32.mrb[0].mxu0
        %v1253 = vadd.f32 0.0, %v1252
        %v1254 = vpop.f32.mrb[0].mxu0
        %1255 = vmatprep.mubr.bf16.mxu0 0
        %1256 = vmatmul.mubr.bf16.gmra.mrb[0].mxu0 %v1182
        %v1257 = vpop.f32.mrb[0].mxu0
        %v1258 = vadd.f32 0.0, %v1257
        %v1259 = vpop.f32.mrb[0].mxu0
        %v1260 = vpop.f32.mrb[0].mxu0
        %v1261 = vadd.f32 0.0, %v1260
        %v1262 = vpop.f32.mrb[0].mxu0
        %1263 = vmatprep.mubr.bf16.mxu0 0
        %1264 = vmatmul.mubr.bf16.gmra.mrb[0].mxu0 %v1185
        %v1265 = vpop.f32.mrb[0].mxu0
        %v1266 = vadd.f32 0.0, %v1265
        %v1267 = vpop.f32.mrb[0].mxu0
        %v1268 = vpop.f32.mrb[0].mxu0
        %v1269 = vadd.f32 0.0, %v1268
        %v1270 = vpop.f32.mrb[0].mxu0
        %1271 = vmatprep.mubr.bf16.mxu0 0
        %1272 = vmatmul.mubr.bf16.gmra.mrb[0].mxu0 %v1188
        %v1273 = vpop.f32.mrb[0].mxu0
        %v1274 = vadd.f32 0.0, %v1273
        %v1275 = vpop.f32.mrb[0].mxu0
        %v1276 = vpop.f32.mrb[0].mxu0
        %v1277 = vadd.f32 0.0, %v1276
        %v1278 = vpop.f32.mrb[0].mxu0
        %1279 = vmatprep.mubr.bf16.mxu0 0
        %1280 = vmatmul.mubr.bf16.gmra.mrb[0].mxu0 %v1191
        %v1281 = vpop.f32.mrb[0].mxu0
        %v1282 = vadd.f32 0.0, %v1281
        %v1283 = vpop.f32.mrb[0].mxu0
        %v1284 = vpop.f32.mrb[0].mxu0
        %v1285 = vadd.f32 0.0, %v1284
        %v1286 = vpop.f32.mrb[0].mxu0
        %1287 = vmatprep.mubr.bf16.mxu0 0
        %1288 = vmatmul.mubr.bf16.gmra.mrb[0].mxu0 %v1194
        %v1289 = vpop.f32.mrb[0].mxu0
        %v1290 = vadd.f32 0.0, %v1289
        %v1291 = vpop.f32.mrb[0].mxu0
        %v1292 = vpop.f32.mrb[0].mxu0
        %v1293 = vadd.f32 0.0, %v1292
        %v1294 = vpop.f32.mrb[0].mxu0
        %1295 = vdwg.mxu0
        %v1296 = vadd.f32 %v1072, %v1234
        %v1297 = vadd.f32 %v1073, %v1237
        %v1298 = vadd.f32 %v1074, %v1242
        %v1299 = vadd.f32 %v1075, %v1245
        %v1300 = vadd.f32 %v1076, %v1250
        %v1301 = vadd.f32 %v1077, %v1253
        %v1302 = vadd.f32 %v1078, %v1258
        %v1303 = vadd.f32 %v1079, %v1261
        %v1304 = vadd.f32 %v1080, %v1266
        %v1305 = vadd.f32 %v1081, %v1269
        %v1306 = vadd.f32 %v1082, %v1274
        %v1307 = vadd.f32 %v1083, %v1277
        %v1308 = vadd.f32 %v1084, %v1282
        %v1309 = vadd.f32 %v1085, %v1285
        %v1310 = vadd.f32 %v1086, %v1290
        %v1311 = vadd.f32 %v1087, %v1293
        %v1312 = vld [vmem:[#allocation2 + $0x8] sm:$0xfc]
        %s1313 = scalar_lea.vmem %s268, 10
        %v1314 = vld [vmem:[%s1313] sm:$0x3]
        %vm1317 = vcmask 1045504
        %v1318 = vrot.slane %v1312, 2
        %v1319 = vrot.slane %v912, 2
        %v1320 = vsel %vm1317, %v1318, %v1319
        %v1321 = vrot.slane %v913, 2
        %v1322 = vsel %vm1317, %v1319, %v1321
        %v1323 = vrot.slane %v914, 2
        %v1324 = vsel %vm1317, %v1321, %v1323
        %v1325 = vrot.slane %v915, 2
        %v1326 = vsel %vm1317, %v1323, %v1325
        %v1327 = vrot.slane %v916, 2
        %v1328 = vsel %vm1317, %v1325, %v1327
        %v1329 = vrot.slane %v917, 2
        %v1330 = vsel %vm1317, %v1327, %v1329
        %v1331 = vrot.slane %v918, 2
        %v1332 = vsel %vm1317, %v1329, %v1331
        %v1333 = vrot.slane %v1088, 2
        %v1334 = vsel %vm1317, %v1331, %v1333
        %v1336 = vsel %vm338, %v1320, 0
        %v1339 = vsel %vm338, %v1322, 0
        %v1342 = vsel %vm338, %v1324, 0
        %v1345 = vsel %vm338, %v1326, 0
        %v1348 = vsel %vm338, %v1328, 0
        %v1351 = vsel %vm338, %v1330, 0
        %v1354 = vsel %vm338, %v1332, 0
        %v1357 = vsel %vm338, %v1334, 0
        %v1360 = vsel %vm524, %v1314, 0
        %1362 = vmatprep.subr.bf16.mxu0 0
        %1363 = vmatpush1.bf16.msra.mxu0 %v1360
        %1364 = vmatprep.subr.bf16.mxu0 0
        %1365 = vmatpush1.bf16.msra.mxu0 0
        %1366 = vmatprep.subr.bf16.mxu0 0
        %1367 = vmatpush1.bf16.msra.mxu0 0
        %1368 = vmatprep.subr.bf16.mxu0 0
        %1369 = vmatpush1.bf16.msra.mxu0 0
        %1370 = vmatprep.subr.bf16.mxu0 0
        %1371 = vmatpush1.bf16.msra.mxu0 0
        %1372 = vmatprep.subr.bf16.mxu0 0
        %1373 = vmatpush1.bf16.msra.mxu0 0
        %1374 = vmatprep.subr.bf16.mxu0 0
        %1375 = vmatpush1.bf16.msra.mxu0 0
        %1376 = vmatprep.subr.bf16.mxu0 0
        %1377 = vmatpush1.bf16.msra.mxu0 0
        %1378 = vmatprep.subr.bf16.mxu0 0
        %1379 = vmatpush1.bf16.msra.mxu0 0
        %1380 = vmatprep.subr.bf16.mxu0 0
        %1381 = vmatpush1.bf16.msra.mxu0 0
        %1382 = vmatprep.subr.bf16.mxu0 0
        %1383 = vmatpush1.bf16.msra.mxu0 0
        %1384 = vmatprep.subr.bf16.mxu0 0
        %1385 = vmatpush1.bf16.msra.mxu0 0
        %1386 = vmatprep.subr.bf16.mxu0 0
        %1387 = vmatpush1.bf16.msra.mxu0 0
        %1388 = vmatprep.subr.bf16.mxu0 0
        %1389 = vmatpush1.bf16.msra.mxu0 0
        %1390 = vmatprep.subr.bf16.mxu0 0
        %1391 = vmatpush1.bf16.msra.mxu0 0
        %1392 = vmatprep.subr.bf16.mxu0 0
        %1393 = vmatpush1.bf16.msra.mxu0 0
        %1394 = vmatprep.mubr.bf16.mxu0 0
        %1395 = vmatmul.mubr.bf16.gmra.mrb[0].mxu0 %v1336
        %v1396 = vpop.f32.mrb[0].mxu0
        %v1397 = vadd.f32 0.0, %v1396
        %v1398 = vpop.f32.mrb[0].mxu0
        %v1399 = vpop.f32.mrb[0].mxu0
        %v1400 = vadd.f32 0.0, %v1399
        %v1401 = vpop.f32.mrb[0].mxu0
        %1402 = vmatprep.mubr.bf16.mxu0 0
        %1403 = vmatmul.mubr.bf16.gmra.mrb[0].mxu0 %v1339
        %v1404 = vpop.f32.mrb[0].mxu0
        %v1405 = vadd.f32 0.0, %v1404
        %v1406 = vpop.f32.mrb[0].mxu0
        %v1407 = vpop.f32.mrb[0].mxu0
        %v1408 = vadd.f32 0.0, %v1407
        %v1409 = vpop.f32.mrb[0].mxu0
        %1410 = vmatprep.mubr.bf16.mxu0 0
        %1411 = vmatmul.mubr.bf16.gmra.mrb[0].mxu0 %v1342
        %v1412 = vpop.f32.mrb[0].mxu0
        %v1413 = vadd.f32 0.0, %v1412
        %v1414 = vpop.f32.mrb[0].mxu0
        %v1415 = vpop.f32.mrb[0].mxu0
        %v1416 = vadd.f32 0.0, %v1415
        %v1417 = vpop.f32.mrb[0].mxu0
        %1418 = vmatprep.mubr.bf16.mxu0 0
        %1419 = vmatmul.mubr.bf16.gmra.mrb[0].mxu0 %v1345
        %v1420 = vpop.f32.mrb[0].mxu0
        %v1421 = vadd.f32 0.0, %v1420
        %v1422 = vpop.f32.mrb[0].mxu0
        %v1423 = vpop.f32.mrb[0].mxu0
        %v1424 = vadd.f32 0.0, %v1423
        %v1425 = vpop.f32.mrb[0].mxu0
        %1426 = vmatprep.mubr.bf16.mxu0 0
        %1427 = vmatmul.mubr.bf16.gmra.mrb[0].mxu0 %v1348
        %v1428 = vpop.f32.mrb[0].mxu0
        %v1429 = vadd.f32 0.0, %v1428
        %v1430 = vpop.f32.mrb[0].mxu0
        %v1431 = vpop.f32.mrb[0].mxu0
        %v1432 = vadd.f32 0.0, %v1431
        %v1433 = vpop.f32.mrb[0].mxu0
        %1434 = vmatprep.mubr.bf16.mxu0 0
        %1435 = vmatmul.mubr.bf16.gmra.mrb[0].mxu0 %v1351
        %v1436 = vpop.f32.mrb[0].mxu0
        %v1437 = vadd.f32 0.0, %v1436
        %v1438 = vpop.f32.mrb[0].mxu0
        %v1439 = vpop.f32.mrb[0].mxu0
        %v1440 = vadd.f32 0.0, %v1439
        %v1441 = vpop.f32.mrb[0].mxu0
        %1442 = vmatprep.mubr.bf16.mxu0 0
        %1443 = vmatmul.mubr.bf16.gmra.mrb[0].mxu0 %v1354
        %v1444 = vpop.f32.mrb[0].mxu0
        %v1445 = vadd.f32 0.0, %v1444
        %v1446 = vpop.f32.mrb[0].mxu0
        %v1447 = vpop.f32.mrb[0].mxu0
        %v1448 = vadd.f32 0.0, %v1447
        %v1449 = vpop.f32.mrb[0].mxu0
        %1450 = vmatprep.mubr.bf16.mxu0 0
        %1451 = vmatmul.mubr.bf16.gmra.mrb[0].mxu0 %v1357
        %v1452 = vpop.f32.mrb[0].mxu0
        %v1453 = vadd.f32 0.0, %v1452
        %v1454 = vpop.f32.mrb[0].mxu0
        %v1455 = vpop.f32.mrb[0].mxu0
        %v1456 = vadd.f32 0.0, %v1455
        %v1457 = vpop.f32.mrb[0].mxu0
        %1458 = vdwg.mxu0
        %v1459 = vadd.f32 %v1296, %v1397
        %v1460 = vadd.f32 %v1297, %v1400
        %v1461 = vadd.f32 %v1298, %v1405
        %v1462 = vadd.f32 %v1299, %v1408
        %v1463 = vadd.f32 %v1300, %v1413
        %v1464 = vadd.f32 %v1301, %v1416
        %v1465 = vadd.f32 %v1302, %v1421
        %v1466 = vadd.f32 %v1303, %v1424
        %v1467 = vadd.f32 %v1304, %v1429
        %v1468 = vadd.f32 %v1305, %v1432
        %v1469 = vadd.f32 %v1306, %v1437
        %v1470 = vadd.f32 %v1307, %v1440
        %v1471 = vadd.f32 %v1308, %v1445
        %v1472 = vadd.f32 %v1309, %v1448
        %v1473 = vadd.f32 %v1310, %v1453
        %v1474 = vadd.f32 %v1311, %v1456
        %v1475 = vld [vmem:[#allocation2 + $0x10] sm:$0xfc]
        %v1476 = vld [vmem:[#allocation2 + $0x18] sm:$0xff]
        %v1477 = vld [vmem:[#allocation2 + $0x20] sm:$0xff]
        %v1478 = vld [vmem:[#allocation2 + $0x28] sm:$0xff]
        %v1479 = vld [vmem:[#allocation2 + $0x30] sm:$0xff]
        %v1480 = vld [vmem:[#allocation2 + $0x38] sm:$0xff]
        %v1481 = vld [vmem:[#allocation2 + $0x40] sm:$0xff]
        %v1482 = vld [vmem:[#allocation2 + $0x48] sm:$0xff]
        %v1483 = vld [vmem:[#allocation2 + $0x50] sm:$0x3]
        %s1484 = scalar_lea.vmem %s268, 12
        %v1485 = vld [vmem:[%s1484] sm:$0x3]
        %v1495 = vrot.slane %v1475, 2
        %v1496 = vrot.slane %v1476, 2
        %v1497 = vsel %vm1317, %v1495, %v1496
        %v1498 = vrot.slane %v1477, 2
        %v1499 = vsel %vm1317, %v1496, %v1498
        %v1500 = vrot.slane %v1478, 2
        %v1501 = vsel %vm1317, %v1498, %v1500
        %v1502 = vrot.slane %v1479, 2
        %v1503 = vsel %vm1317, %v1500, %v1502
        %v1504 = vrot.slane %v1480, 2
        %v1505 = vsel %vm1317, %v1502, %v1504
        %v1506 = vrot.slane %v1481, 2
        %v1507 = vsel %vm1317, %v1504, %v1506
        %v1508 = vrot.slane %v1482, 2
        %v1509 = vsel %vm1317, %v1506, %v1508
        %v1510 = vrot.slane %v1483, 2
        %v1511 = vsel %vm1317, %v1508, %v1510
        %v1513 = vsel %vm338, %v1497, 0
        %v1516 = vsel %vm338, %v1499, 0
        %v1519 = vsel %vm338, %v1501, 0
        %v1522 = vsel %vm338, %v1503, 0
        %v1525 = vsel %vm338, %v1505, 0
        %v1528 = vsel %vm338, %v1507, 0
        %v1531 = vsel %vm338, %v1509, 0
        %v1534 = vsel %vm338, %v1511, 0
        %v1537 = vsel %vm524, %v1485, 0
        %1539 = vmatprep.subr.bf16.mxu0 0
        %1540 = vmatpush1.bf16.msra.mxu0 %v1537
        %1541 = vmatprep.subr.bf16.mxu0 0
        %1542 = vmatpush1.bf16.msra.mxu0 0
        %1543 = vmatprep.subr.bf16.mxu0 0
        %1544 = vmatpush1.bf16.msra.mxu0 0
        %1545 = vmatprep.subr.bf16.mxu0 0
        %1546 = vmatpush1.bf16.msra.mxu0 0
        %1547 = vmatprep.subr.bf16.mxu0 0
        %1548 = vmatpush1.bf16.msra.mxu0 0
        %1549 = vmatprep.subr.bf16.mxu0 0
        %1550 = vmatpush1.bf16.msra.mxu0 0
        %1551 = vmatprep.subr.bf16.mxu0 0
        %1552 = vmatpush1.bf16.msra.mxu0 0
        %1553 = vmatprep.subr.bf16.mxu0 0
        %1554 = vmatpush1.bf16.msra.mxu0 0
        %1555 = vmatprep.subr.bf16.mxu0 0
        %1556 = vmatpush1.bf16.msra.mxu0 0
        %1557 = vmatprep.subr.bf16.mxu0 0
        %1558 = vmatpush1.bf16.msra.mxu0 0
        %1559 = vmatprep.subr.bf16.mxu0 0
        %1560 = vmatpush1.bf16.msra.mxu0 0
        %1561 = vmatprep.subr.bf16.mxu0 0
        %1562 = vmatpush1.bf16.msra.mxu0 0
        %1563 = vmatprep.subr.bf16.mxu0 0
        %1564 = vmatpush1.bf16.msra.mxu0 0
        %1565 = vmatprep.subr.bf16.mxu0 0
        %1566 = vmatpush1.bf16.msra.mxu0 0
        %1567 = vmatprep.subr.bf16.mxu0 0
        %1568 = vmatpush1.bf16.msra.mxu0 0
        %1569 = vmatprep.subr.bf16.mxu0 0
        %1570 = vmatpush1.bf16.msra.mxu0 0
        %1571 = vmatprep.mubr.bf16.mxu0 0
        %1572 = vmatmul.mubr.bf16.gmra.mrb[0].mxu0 %v1513
        %v1573 = vpop.f32.mrb[0].mxu0
        %v1574 = vadd.f32 0.0, %v1573
        %v1575 = vpop.f32.mrb[0].mxu0
        %v1576 = vpop.f32.mrb[0].mxu0
        %v1577 = vadd.f32 0.0, %v1576
        %v1578 = vpop.f32.mrb[0].mxu0
        %1579 = vmatprep.mubr.bf16.mxu0 0
        %1580 = vmatmul.mubr.bf16.gmra.mrb[0].mxu0 %v1516
        %v1581 = vpop.f32.mrb[0].mxu0
        %v1582 = vadd.f32 0.0, %v1581
        %v1583 = vpop.f32.mrb[0].mxu0
        %v1584 = vpop.f32.mrb[0].mxu0
        %v1585 = vadd.f32 0.0, %v1584
        %v1586 = vpop.f32.mrb[0].mxu0
        %1587 = vmatprep.mubr.bf16.mxu0 0
        %1588 = vmatmul.mubr.bf16.gmra.mrb[0].mxu0 %v1519
        %v1589 = vpop.f32.mrb[0].mxu0
        %v1590 = vadd.f32 0.0, %v1589
        %v1591 = vpop.f32.mrb[0].mxu0
        %v1592 = vpop.f32.mrb[0].mxu0
        %v1593 = vadd.f32 0.0, %v1592
        %v1594 = vpop.f32.mrb[0].mxu0
        %1595 = vmatprep.mubr.bf16.mxu0 0
        %1596 = vmatmul.mubr.bf16.gmra.mrb[0].mxu0 %v1522
        %v1597 = vpop.f32.mrb[0].mxu0
        %v1598 = vadd.f32 0.0, %v1597
        %v1599 = vpop.f32.mrb[0].mxu0
        %v1600 = vpop.f32.mrb[0].mxu0
        %v1601 = vadd.f32 0.0, %v1600
        %v1602 = vpop.f32.mrb[0].mxu0
        %1603 = vmatprep.mubr.bf16.mxu0 0
        %1604 = vmatmul.mubr.bf16.gmra.mrb[0].mxu0 %v1525
        %v1605 = vpop.f32.mrb[0].mxu0
        %v1606 = vadd.f32 0.0, %v1605
        %v1607 = vpop.f32.mrb[0].mxu0
        %v1608 = vpop.f32.mrb[0].mxu0
        %v1609 = vadd.f32 0.0, %v1608
        %v1610 = vpop.f32.mrb[0].mxu0
        %1611 = vmatprep.mubr.bf16.mxu0 0
        %1612 = vmatmul.mubr.bf16.gmra.mrb[0].mxu0 %v1528
        %v1613 = vpop.f32.mrb[0].mxu0
        %v1614 = vadd.f32 0.0, %v1613
        %v1615 = vpop.f32.mrb[0].mxu0
        %v1616 = vpop.f32.mrb[0].mxu0
        %v1617 = vadd.f32 0.0, %v1616
        %v1618 = vpop.f32.mrb[0].mxu0
        %1619 = vmatprep.mubr.bf16.mxu0 0
        %1620 = vmatmul.mubr.bf16.gmra.mrb[0].mxu0 %v1531
        %v1621 = vpop.f32.mrb[0].mxu0
        %v1622 = vadd.f32 0.0, %v1621
        %v1623 = vpop.f32.mrb[0].mxu0
        %v1624 = vpop.f32.mrb[0].mxu0
        %v1625 = vadd.f32 0.0, %v1624
        %v1626 = vpop.f32.mrb[0].mxu0
        %1627 = vmatprep.mubr.bf16.mxu0 0
        %1628 = vmatmul.mubr.bf16.gmra.mrb[0].mxu0 %v1534
        %v1629 = vpop.f32.mrb[0].mxu0
        %v1630 = vadd.f32 0.0, %v1629
        %v1631 = vpop.f32.mrb[0].mxu0
        %v1632 = vpop.f32.mrb[0].mxu0
        %v1633 = vadd.f32 0.0, %v1632
        %v1634 = vpop.f32.mrb[0].mxu0
        %1635 = vdwg.mxu0
        %v1636 = vadd.f32 %v1459, %v1574
        %v1637 = vadd.f32 %v1460, %v1577
        %v1638 = vadd.f32 %v1461, %v1582
        %v1639 = vadd.f32 %v1462, %v1585
        %v1640 = vadd.f32 %v1463, %v1590
        %v1641 = vadd.f32 %v1464, %v1593
        %v1642 = vadd.f32 %v1465, %v1598
        %v1643 = vadd.f32 %v1466, %v1601
        %v1644 = vadd.f32 %v1467, %v1606
        %v1645 = vadd.f32 %v1468, %v1609
        %v1646 = vadd.f32 %v1469, %v1614
        %v1647 = vadd.f32 %v1470, %v1617
        %v1648 = vadd.f32 %v1471, %v1622
        %v1649 = vadd.f32 %v1472, %v1625
        %v1650 = vadd.f32 %v1473, %v1630
        %v1651 = vadd.f32 %v1474, %v1633
        %v1652 = vld [vmem:[#allocation2 + $0x50] sm:$0x7]
        %s1653 = scalar_lea.vmem %s268, 14
        %v1654 = vld [vmem:[%s1653] sm:$0x3]
        %vm1655 = vsmask.f32 5376
        %v1657 = vshrl.u32 %v1475, 16
        %v1659 = vrot.slane %v1657, 2
        %v1660 = vshll.u32 %v1475, 16
        %v1662 = vrot.slane %v1660, 3
        %v1663 = vor.u32 %v1659, %v1662
        %v1665 = vshrl.u32 %v1476, 16
        %v1667 = vrot.slane %v1665, 2
        %v1668 = vshll.u32 %v1476, 16
        %v1670 = vrot.slane %v1668, 3
        %v1671 = vor.u32 %v1667, %v1670
        %v1672 = vsel %vm1655, %v1663, %v1671
        %v1674 = vshrl.u32 %v1477, 16
        %v1676 = vrot.slane %v1674, 2
        %v1677 = vshll.u32 %v1477, 16
        %v1679 = vrot.slane %v1677, 3
        %v1680 = vor.u32 %v1676, %v1679
        %v1681 = vsel %vm1655, %v1671, %v1680
        %v1683 = vshrl.u32 %v1478, 16
        %v1685 = vrot.slane %v1683, 2
        %v1686 = vshll.u32 %v1478, 16
        %v1688 = vrot.slane %v1686, 3
        %v1689 = vor.u32 %v1685, %v1688
        %v1690 = vsel %vm1655, %v1680, %v1689
        %v1692 = vshrl.u32 %v1479, 16
        %v1694 = vrot.slane %v1692, 2
        %v1695 = vshll.u32 %v1479, 16
        %v1697 = vrot.slane %v1695, 3
        %v1698 = vor.u32 %v1694, %v1697
        %v1699 = vsel %vm1655, %v1689, %v1698
        %v1701 = vshrl.u32 %v1480, 16
        %v1703 = vrot.slane %v1701, 2
        %v1704 = vshll.u32 %v1480, 16
        %v1706 = vrot.slane %v1704, 3
        %v1707 = vor.u32 %v1703, %v1706
        %v1708 = vsel %vm1655, %v1698, %v1707
        %v1710 = vshrl.u32 %v1481, 16
        %v1712 = vrot.slane %v1710, 2
        %v1713 = vshll.u32 %v1481, 16
        %v1715 = vrot.slane %v1713, 3
        %v1716 = vor.u32 %v1712, %v1715
        %v1717 = vsel %vm1655, %v1707, %v1716
        %v1719 = vshrl.u32 %v1482, 16
        %v1721 = vrot.slane %v1719, 2
        %v1722 = vshll.u32 %v1482, 16
        %v1724 = vrot.slane %v1722, 3
        %v1725 = vor.u32 %v1721, %v1724
        %v1726 = vsel %vm1655, %v1716, %v1725
        %v1728 = vshrl.u32 %v1652, 16
        %v1730 = vrot.slane %v1728, 2
        %v1731 = vshll.u32 %v1652, 16
        %v1733 = vrot.slane %v1731, 3
        %v1734 = vor.u32 %v1730, %v1733
        %v1735 = vsel %vm1655, %v1725, %v1734
        %v1737 = vsel %vm338, %v1672, 0
        %v1740 = vsel %vm338, %v1681, 0
        %v1743 = vsel %vm338, %v1690, 0
        %v1746 = vsel %vm338, %v1699, 0
        %v1749 = vsel %vm338, %v1708, 0
        %v1752 = vsel %vm338, %v1717, 0
        %v1755 = vsel %vm338, %v1726, 0
        %v1758 = vsel %vm338, %v1735, 0
        %v1761 = vsel %vm524, %v1654, 0
        %1763 = vmatprep.subr.bf16.mxu0 0
        %1764 = vmatpush1.bf16.msra.mxu0 %v1761
        %1765 = vmatprep.subr.bf16.mxu0 0
        %1766 = vmatpush1.bf16.msra.mxu0 0
        %1767 = vmatprep.subr.bf16.mxu0 0
        %1768 = vmatpush1.bf16.msra.mxu0 0
        %1769 = vmatprep.subr.bf16.mxu0 0
        %1770 = vmatpush1.bf16.msra.mxu0 0
        %1771 = vmatprep.subr.bf16.mxu0 0
        %1772 = vmatpush1.bf16.msra.mxu0 0
        %1773 = vmatprep.subr.bf16.mxu0 0
        %1774 = vmatpush1.bf16.msra.mxu0 0
        %1775 = vmatprep.subr.bf16.mxu0 0
        %1776 = vmatpush1.bf16.msra.mxu0 0
        %1777 = vmatprep.subr.bf16.mxu0 0
        %1778 = vmatpush1.bf16.msra.mxu0 0
        %1779 = vmatprep.subr.bf16.mxu0 0
        %1780 = vmatpush1.bf16.msra.mxu0 0
        %1781 = vmatprep.subr.bf16.mxu0 0
        %1782 = vmatpush1.bf16.msra.mxu0 0
        %1783 = vmatprep.subr.bf16.mxu0 0
        %1784 = vmatpush1.bf16.msra.mxu0 0
        %1785 = vmatprep.subr.bf16.mxu0 0
        %1786 = vmatpush1.bf16.msra.mxu0 0
        %1787 = vmatprep.subr.bf16.mxu0 0
        %1788 = vmatpush1.bf16.msra.mxu0 0
        %1789 = vmatprep.subr.bf16.mxu0 0
        %1790 = vmatpush1.bf16.msra.mxu0 0
        %1791 = vmatprep.subr.bf16.mxu0 0
        %1792 = vmatpush1.bf16.msra.mxu0 0
        %1793 = vmatprep.subr.bf16.mxu0 0
        %1794 = vmatpush1.bf16.msra.mxu0 0
        %1795 = vmatprep.mubr.bf16.mxu0 0
        %1796 = vmatmul.mubr.bf16.gmra.mrb[0].mxu0 %v1737
        %v1797 = vpop.f32.mrb[0].mxu0
        %v1798 = vadd.f32 0.0, %v1797
        %v1799 = vpop.f32.mrb[0].mxu0
        %v1800 = vpop.f32.mrb[0].mxu0
        %v1801 = vadd.f32 0.0, %v1800
        %v1802 = vpop.f32.mrb[0].mxu0
        %1803 = vmatprep.mubr.bf16.mxu0 0
        %1804 = vmatmul.mubr.bf16.gmra.mrb[0].mxu0 %v1740
        %v1805 = vpop.f32.mrb[0].mxu0
        %v1806 = vadd.f32 0.0, %v1805
        %v1807 = vpop.f32.mrb[0].mxu0
        %v1808 = vpop.f32.mrb[0].mxu0
        %v1809 = vadd.f32 0.0, %v1808
        %v1810 = vpop.f32.mrb[0].mxu0
        %1811 = vmatprep.mubr.bf16.mxu0 0
        %1812 = vmatmul.mubr.bf16.gmra.mrb[0].mxu0 %v1743
        %v1813 = vpop.f32.mrb[0].mxu0
        %v1814 = vadd.f32 0.0, %v1813
        %v1815 = vpop.f32.mrb[0].mxu0
        %v1816 = vpop.f32.mrb[0].mxu0
        %v1817 = vadd.f32 0.0, %v1816
        %v1818 = vpop.f32.mrb[0].mxu0
        %1819 = vmatprep.mubr.bf16.mxu0 0
        %1820 = vmatmul.mubr.bf16.gmra.mrb[0].mxu0 %v1746
        %v1821 = vpop.f32.mrb[0].mxu0
        %v1822 = vadd.f32 0.0, %v1821
        %v1823 = vpop.f32.mrb[0].mxu0
        %v1824 = vpop.f32.mrb[0].mxu0
        %v1825 = vadd.f32 0.0, %v1824
        %v1826 = vpop.f32.mrb[0].mxu0
        %1827 = vmatprep.mubr.bf16.mxu0 0
        %1828 = vmatmul.mubr.bf16.gmra.mrb[0].mxu0 %v1749
        %v1829 = vpop.f32.mrb[0].mxu0
        %v1830 = vadd.f32 0.0, %v1829
        %v1831 = vpop.f32.mrb[0].mxu0
        %v1832 = vpop.f32.mrb[0].mxu0
        %v1833 = vadd.f32 0.0, %v1832
        %v1834 = vpop.f32.mrb[0].mxu0
        %1835 = vmatprep.mubr.bf16.mxu0 0
        %1836 = vmatmul.mubr.bf16.gmra.mrb[0].mxu0 %v1752
        %v1837 = vpop.f32.mrb[0].mxu0
        %v1838 = vadd.f32 0.0, %v1837
        %v1839 = vpop.f32.mrb[0].mxu0
        %v1840 = vpop.f32.mrb[0].mxu0
        %v1841 = vadd.f32 0.0, %v1840
        %v1842 = vpop.f32.mrb[0].mxu0
        %1843 = vmatprep.mubr.bf16.mxu0 0
        %1844 = vmatmul.mubr.bf16.gmra.mrb[0].mxu0 %v1755
        %v1845 = vpop.f32.mrb[0].mxu0
        %v1846 = vadd.f32 0.0, %v1845
        %v1847 = vpop.f32.mrb[0].mxu0
        %v1848 = vpop.f32.mrb[0].mxu0
        %v1849 = vadd.f32 0.0, %v1848
        %v1850 = vpop.f32.mrb[0].mxu0
        %1851 = vmatprep.mubr.bf16.mxu0 0
        %1852 = vmatmul.mubr.bf16.gmra.mrb[0].mxu0 %v1758
        %v1853 = vpop.f32.mrb[0].mxu0
        %v1854 = vadd.f32 0.0, %v1853
        %v1855 = vpop.f32.mrb[0].mxu0
        %v1856 = vpop.f32.mrb[0].mxu0
        %v1857 = vadd.f32 0.0, %v1856
        %v1858 = vpop.f32.mrb[0].mxu0
        %1859 = vdwg.mxu0
        %v1860 = vadd.f32 %v1636, %v1798
        %v1861 = vadd.f32 %v1637, %v1801
        %v1862 = vadd.f32 %v1638, %v1806
        %v1863 = vadd.f32 %v1639, %v1809
        %v1864 = vadd.f32 %v1640, %v1814
        %v1865 = vadd.f32 %v1641, %v1817
        %v1866 = vadd.f32 %v1642, %v1822
        %v1867 = vadd.f32 %v1643, %v1825
        %v1868 = vadd.f32 %v1644, %v1830
        %v1869 = vadd.f32 %v1645, %v1833
        %v1870 = vadd.f32 %v1646, %v1838
        %v1871 = vadd.f32 %v1647, %v1841
        %v1872 = vadd.f32 %v1648, %v1846
        %v1873 = vadd.f32 %v1649, %v1849
        %v1874 = vadd.f32 %v1650, %v1854
        %v1875 = vadd.f32 %v1651, %v1857
        %v1876 = vld [vmem:[#allocation2 + $0x10] sm:$0xf8]
        %s1877 = scalar_lea.vmem %s268, 16
        %v1878 = vld [vmem:[%s1877] sm:$0x3]
        %vm1881 = vcmask 1044480
        %v1882 = vrot.slane %v1876, 3
        %v1883 = vrot.slane %v1476, 3
        %v1884 = vsel %vm1881, %v1882, %v1883
        %v1885 = vrot.slane %v1477, 3
        %v1886 = vsel %vm1881, %v1883, %v1885
        %v1887 = vrot.slane %v1478, 3
        %v1888 = vsel %vm1881, %v1885, %v1887
        %v1889 = vrot.slane %v1479, 3
        %v1890 = vsel %vm1881, %v1887, %v1889
        %v1891 = vrot.slane %v1480, 3
        %v1892 = vsel %vm1881, %v1889, %v1891
        %v1893 = vrot.slane %v1481, 3
        %v1894 = vsel %vm1881, %v1891, %v1893
        %v1895 = vrot.slane %v1482, 3
        %v1896 = vsel %vm1881, %v1893, %v1895
        %v1897 = vrot.slane %v1652, 3
        %v1898 = vsel %vm1881, %v1895, %v1897
        %v1900 = vsel %vm338, %v1884, 0
        %v1903 = vsel %vm338, %v1886, 0
        %v1906 = vsel %vm338, %v1888, 0
        %v1909 = vsel %vm338, %v1890, 0
        %v1912 = vsel %vm338, %v1892, 0
        %v1915 = vsel %vm338, %v1894, 0
        %v1918 = vsel %vm338, %v1896, 0
        %v1921 = vsel %vm338, %v1898, 0
        %v1924 = vsel %vm524, %v1878, 0
        %1926 = vmatprep.subr.bf16.mxu0 0
        %1927 = vmatpush1.bf16.msra.mxu0 %v1924
        %1928 = vmatprep.subr.bf16.mxu0 0
        %1929 = vmatpush1.bf16.msra.mxu0 0
        %1930 = vmatprep.subr.bf16.mxu0 0
        %1931 = vmatpush1.bf16.msra.mxu0 0
        %1932 = vmatprep.subr.bf16.mxu0 0
        %1933 = vmatpush1.bf16.msra.mxu0 0
        %1934 = vmatprep.subr.bf16.mxu0 0
        %1935 = vmatpush1.bf16.msra.mxu0 0
        %1936 = vmatprep.subr.bf16.mxu0 0
        %1937 = vmatpush1.bf16.msra.mxu0 0
        %1938 = vmatprep.subr.bf16.mxu0 0
        %1939 = vmatpush1.bf16.msra.mxu0 0
        %1940 = vmatprep.subr.bf16.mxu0 0
        %1941 = vmatpush1.bf16.msra.mxu0 0
        %1942 = vmatprep.subr.bf16.mxu0 0
        %1943 = vmatpush1.bf16.msra.mxu0 0
        %1944 = vmatprep.subr.bf16.mxu0 0
        %1945 = vmatpush1.bf16.msra.mxu0 0
        %1946 = vmatprep.subr.bf16.mxu0 0
        %1947 = vmatpush1.bf16.msra.mxu0 0
        %1948 = vmatprep.subr.bf16.mxu0 0
        %1949 = vmatpush1.bf16.msra.mxu0 0
        %1950 = vmatprep.subr.bf16.mxu0 0
        %1951 = vmatpush1.bf16.msra.mxu0 0
        %1952 = vmatprep.subr.bf16.mxu0 0
        %1953 = vmatpush1.bf16.msra.mxu0 0
        %1954 = vmatprep.subr.bf16.mxu0 0
        %1955 = vmatpush1.bf16.msra.mxu0 0
        %1956 = vmatprep.subr.bf16.mxu0 0
        %1957 = vmatpush1.bf16.msra.mxu0 0
        %1958 = vmatprep.mubr.bf16.mxu0 0
        %1959 = vmatmul.mubr.bf16.gmra.mrb[0].mxu0 %v1900
        %v1960 = vpop.f32.mrb[0].mxu0
        %v1961 = vadd.f32 0.0, %v1960
        %v1962 = vpop.f32.mrb[0].mxu0
        %v1963 = vpop.f32.mrb[0].mxu0
        %v1964 = vadd.f32 0.0, %v1963
        %v1965 = vpop.f32.mrb[0].mxu0
        %1966 = vmatprep.mubr.bf16.mxu0 0
        %1967 = vmatmul.mubr.bf16.gmra.mrb[0].mxu0 %v1903
        %v1968 = vpop.f32.mrb[0].mxu0
        %v1969 = vadd.f32 0.0, %v1968
        %v1970 = vpop.f32.mrb[0].mxu0
        %v1971 = vpop.f32.mrb[0].mxu0
        %v1972 = vadd.f32 0.0, %v1971
        %v1973 = vpop.f32.mrb[0].mxu0
        %1974 = vmatprep.mubr.bf16.mxu0 0
        %1975 = vmatmul.mubr.bf16.gmra.mrb[0].mxu0 %v1906
        %v1976 = vpop.f32.mrb[0].mxu0
        %v1977 = vadd.f32 0.0, %v1976
        %v1978 = vpop.f32.mrb[0].mxu0
        %v1979 = vpop.f32.mrb[0].mxu0
        %v1980 = vadd.f32 0.0, %v1979
        %v1981 = vpop.f32.mrb[0].mxu0
        %1982 = vmatprep.mubr.bf16.mxu0 0
        %1983 = vmatmul.mubr.bf16.gmra.mrb[0].mxu0 %v1909
        %v1984 = vpop.f32.mrb[0].mxu0
        %v1985 = vadd.f32 0.0, %v1984
        %v1986 = vpop.f32.mrb[0].mxu0
        %v1987 = vpop.f32.mrb[0].mxu0
        %v1988 = vadd.f32 0.0, %v1987
        %v1989 = vpop.f32.mrb[0].mxu0
        %1990 = vmatprep.mubr.bf16.mxu0 0
        %1991 = vmatmul.mubr.bf16.gmra.mrb[0].mxu0 %v1912
        %v1992 = vpop.f32.mrb[0].mxu0
        %v1993 = vadd.f32 0.0, %v1992
        %v1994 = vpop.f32.mrb[0].mxu0
        %v1995 = vpop.f32.mrb[0].mxu0
        %v1996 = vadd.f32 0.0, %v1995
        %v1997 = vpop.f32.mrb[0].mxu0
        %1998 = vmatprep.mubr.bf16.mxu0 0
        %1999 = vmatmul.mubr.bf16.gmra.mrb[0].mxu0 %v1915
        %v2000 = vpop.f32.mrb[0].mxu0
        %v2001 = vadd.f32 0.0, %v2000
        %v2002 = vpop.f32.mrb[0].mxu0
        %v2003 = vpop.f32.mrb[0].mxu0
        %v2004 = vadd.f32 0.0, %v2003
        %v2005 = vpop.f32.mrb[0].mxu0
        %2006 = vmatprep.mubr.bf16.mxu0 0
        %2007 = vmatmul.mubr.bf16.gmra.mrb[0].mxu0 %v1918
        %v2008 = vpop.f32.mrb[0].mxu0
        %v2009 = vadd.f32 0.0, %v2008
        %v2010 = vpop.f32.mrb[0].mxu0
        %v2011 = vpop.f32.mrb[0].mxu0
        %v2012 = vadd.f32 0.0, %v2011
        %v2013 = vpop.f32.mrb[0].mxu0
        %2014 = vmatprep.mubr.bf16.mxu0 0
        %2015 = vmatmul.mubr.bf16.gmra.mrb[0].mxu0 %v1921
        %v2016 = vpop.f32.mrb[0].mxu0
        %v2017 = vadd.f32 0.0, %v2016
        %v2018 = vpop.f32.mrb[0].mxu0
        %v2019 = vpop.f32.mrb[0].mxu0
        %v2020 = vadd.f32 0.0, %v2019
        %v2021 = vpop.f32.mrb[0].mxu0
        %2022 = vdwg.mxu0
        %v2023 = vadd.f32 %v1860, %v1961
        %v2024 = vadd.f32 %v1861, %v1964
        %v2025 = vadd.f32 %v1862, %v1969
        %v2026 = vadd.f32 %v1863, %v1972
        %v2027 = vadd.f32 %v1864, %v1977
        %v2028 = vadd.f32 %v1865, %v1980
        %v2029 = vadd.f32 %v1866, %v1985
        %v2030 = vadd.f32 %v1867, %v1988
        %v2031 = vadd.f32 %v1868, %v1993
        %v2032 = vadd.f32 %v1869, %v1996
        %v2033 = vadd.f32 %v1870, %v2001
        %v2034 = vadd.f32 %v1871, %v2004
        %v2035 = vadd.f32 %v1872, %v2009
        %v2036 = vadd.f32 %v1873, %v2012
        %v2037 = vadd.f32 %v1874, %v2017
        %v2038 = vadd.f32 %v1875, %v2020
        %v2039 = vld [vmem:[%s271] sm:$0x1]
        %v2041 = vlaneseq
        %v2042 = vshrl.u32 %v2041, 7
        %v2043 = vsub.s32 0, %v2042
        %v2044 = vrot.slane %v2039, %v2043
        %v2046 = vadd.f32 %v2023, %v2044
        %v2047 = vadd.f32 %v2024, %v2044
        %v2048 = vadd.f32 %v2025, %v2044
        %v2049 = vadd.f32 %v2026, %v2044
        %v2050 = vadd.f32 %v2027, %v2044
        %v2051 = vadd.f32 %v2028, %v2044
        %v2052 = vadd.f32 %v2029, %v2044
        %v2053 = vadd.f32 %v2030, %v2044
        %v2054 = vadd.f32 %v2031, %v2044
        %v2055 = vadd.f32 %v2032, %v2044
        %v2056 = vadd.f32 %v2033, %v2044
        %v2057 = vadd.f32 %v2034, %v2044
        %v2058 = vadd.f32 %v2035, %v2044
        %v2059 = vadd.f32 %v2036, %v2044
        %v2060 = vadd.f32 %v2037, %v2044
        %v2061 = vadd.f32 %v2038, %v2044
        %v2062 = vmax.f32 %v2046, 0.0
        %v2063 = vmax.f32 %v2047, 0.0
        %v2064 = vmax.f32 %v2048, 0.0
        %v2065 = vmax.f32 %v2049, 0.0
        %v2066 = vmax.f32 %v2050, 0.0
        %v2067 = vmax.f32 %v2051, 0.0
        %v2068 = vmax.f32 %v2052, 0.0
        %v2069 = vmax.f32 %v2053, 0.0
        %v2070 = vmax.f32 %v2054, 0.0
        %v2071 = vmax.f32 %v2055, 0.0
        %v2072 = vmax.f32 %v2056, 0.0
        %v2073 = vmax.f32 %v2057, 0.0
        %v2074 = vmax.f32 %v2058, 0.0
        %v2075 = vmax.f32 %v2059, 0.0
        %v2076 = vmax.f32 %v2060, 0.0
        %v2077 = vmax.f32 %v2061, 0.0
        %2078 = vst [vmem:[%s250] sm:$0xff] %v2062
        %2079 = vst [vmem:[%s250 + $0x8] sm:$0xff] %v2063
        %2080 = vst [vmem:[%s250 + $0x10] sm:$0xff] %v2064
        %2081 = vst [vmem:[%s250 + $0x18] sm:$0xff] %v2065
        %2082 = vst [vmem:[%s250 + $0x20] sm:$0xff] %v2066
        %2083 = vst [vmem:[%s250 + $0x28] sm:$0xff] %v2067
        %2084 = vst [vmem:[%s250 + $0x30] sm:$0xff] %v2068
        %2085 = vst [vmem:[%s250 + $0x38] sm:$0xff] %v2069
        %2086 = vst [vmem:[%s250 + $0x40] sm:$0xff] %v2070
        %2087 = vst [vmem:[%s250 + $0x48] sm:$0xff] %v2071
        %2088 = vst [vmem:[%s250 + $0x50] sm:$0xff] %v2072
        %2089 = vst [vmem:[%s250 + $0x58] sm:$0xff] %v2073
        %2090 = vst [vmem:[%s250 + $0x60] sm:$0xff] %v2074
        %2091 = vst [vmem:[%s250 + $0x68] sm:$0xff] %v2075
        %2092 = vst [vmem:[%s250 + $0x70] sm:$0xff] %v2076
        %2093 = vst [vmem:[%s250 + $0x78] sm:$0xff] %v2077
        %s2094 = sand.u32 %s146, 1
        %s2095 = scalar_lea.sflag [#allocation4], %s2094
        %s2096 = sand.u32 %s146, 1
        %s2097 = smul.addr %s2096, 128
        %s2098 = scalar_lea.vmem [#allocation3], %s2097
        // Predicated region
        $region37: #{tpu_custom_call.1} parent=35 // pred_check
          %p2099 = pneg %p156
        $region38: #{tpu_custom_call.1} parent=35 // pred_check_branch
          %2101 = sbr.rel (%p2099) target = $region40
        $region39: #{tpu_custom_call.1} parent=35 // pred_region
          %s2102 = smul.u32 16, %s22
          %s2104 = ssub.s32 2048, 2048
          %2105 = vsyncadd %s2095, %s2104
          %s2106 = sadd.s32 %s23, %s2102
          %s2107 = smul.addr %s2106, 128
          %s2108 = scalar_lea.hbm %s4, %s2107
          %s2109 = sshll.u32 %s2098, 4
          %s2110 = int_to_ptr.vmem [resolvable:$true] %s2109
          %2115 = dma.vmem_to_hbm [thread:$0]  %s2110, 2048, %s2108, %s2095, 128, 128, 8
        $region40: #{tpu_custom_call.1} parent=35 // pred_fallthru
          _
      $region36: #{tpu_custom_call.1} parent=5 // pred_fallthru
        _
      %p2116 = scmp.le.s32.totalorder 2, %s13
      // Predicated region
      $region41: #{tpu_custom_call.1} parent=5 // pred_check
        %p2117 = pneg %p2116
      $region42: #{tpu_custom_call.1} parent=5 // pred_check_branch
        %2119 = sbr.rel (%p2117) target = $region44
      $region43: #{tpu_custom_call.1} parent=5 // pred_region
        %s2120 = ssub.s32 %s13, 2
        // Predicated region
        $region45: #{tpu_custom_call.1} parent=43 // pred_check
          %p2121 = pneg %p162
        $region46: #{tpu_custom_call.1} parent=43 // pred_check_branch
          %2123 = sbr.rel (%p2121) target = $region48
        $region47: #{tpu_custom_call.1} parent=43 // pred_region
          %s2124 = sand.u32 %s147, 1
          %s2125 = scalar_lea.sflag [#allocation4], %s2124
          %s2126 = sand.u32 %s147, 1
          %s2127 = smul.addr %s2126, 128
          %s2128 = scalar_lea.vmem [#allocation3], %s2127
          %2129 = dma.done %s2125, 2048
        $region48: #{tpu_custom_call.1} parent=43 // pred_fallthru
          _
      $region44: #{tpu_custom_call.1} parent=5 // pred_fallthru
        _
    $region6: #{tpu_custom_call.1} parent=1 // loop_footer
      %s17 = sadd.s32 1, %s13
    $region7: #{tpu_custom_call.1} parent=1 // loop_footer_branch
      %12 = sbr.rel target = $region3
    $region8: #{tpu_custom_call.1} parent=1 // loop_exit
      _
    %2130 = vsyncpa [#allocation4], 1
    %s2131 = scalar_lea.sflag [#allocation4], 1
    %2132 = vsyncpa %s2131, 1

</llo_original>
